<compile_context>
chip_gen: v6e
topology: v6e:2x2x1
jax: 0.10.0
libtpu: 0.0.40
codegen_flags: <defaults>
</compile_context>

<pallas_src>
import functools
import math

import jax
import jax.numpy as jnp
from jax.experimental import pallas as pl
from jax.experimental.pallas import tpu as pltpu


# ---------------------------------------------------------------------------
# Kernels
# ---------------------------------------------------------------------------
def _emsa_fused_kernel(xq_ref, xkv_ref, wq_ref, bq_ref, wk_ref, bk_ref,
                       wv_ref, bv_ref, o_ref,
                       q_scr, k_scr, v_scr, m_scr, l_scr, acc_scr,
                       *, s_valid, masked):
    """Fused projections + flash attention.  Grid = (bi, qi, ki)."""
    qi = pl.program_id(1)
    ki = pl.program_id(2)
    bt, tq, H = q_scr.shape
    tk = xkv_ref.shape[1]
    off = pl.multiple_of(ki * tk, 8)

    # K/V projection: fill the persistent per-batch-tile VMEM cache exactly
    # once (while sweeping the first query tile).  For qi > 0 the cached,
    # already-projected tiles are reused -> no (S/tq)x recompute / re-DMA.
    @pl.when(qi == 0)
    def _fill_kv():
        xkv = xkv_ref[...].reshape(bt * tk, H)
        k = jnp.dot(xkv, wk_ref[...],
                    preferred_element_type=jnp.float32) + bk_ref[...]
        v = jnp.dot(xkv, wv_ref[...],
                    preferred_element_type=jnp.float32) + bv_ref[...]
        k_scr[:, pl.ds(off, tk), :] = k.reshape(bt, tk, H).astype(k_scr.dtype)
        v_scr[:, pl.ds(off, tk), :] = v.reshape(bt, tk, H).astype(v_scr.dtype)

    # Scaled-Q projection (1/sqrt(H) folded into wq/bq by the wrapper), once
    # per (batch, query) tile; also (re-)initialize the online-softmax state.
    @pl.when(ki == 0)
    def _init():
        xq = xq_ref[...].reshape(bt * tq, H)
        q = jnp.dot(xq, wq_ref[...],
                    preferred_element_type=jnp.float32) + bq_ref[...]
        q_scr[...] = q.reshape(bt, tq, H).astype(q_scr.dtype)
        m_scr[...] = jnp.full_like(m_scr, -jnp.inf)
        l_scr[...] = jnp.zeros_like(l_scr)
        acc_scr[...] = jnp.zeros_like(acc_scr)

    k = k_scr[:, pl.ds(off, tk), :]
    v = v_scr[:, pl.ds(off, tk), :]

    # Scores: contract hidden dim of both operands (no explicit k.T / XLU).
    s = jax.lax.dot_general(
        q_scr[...], k,
        dimension_numbers=(((2,), (2,)), ((0,), (0,))),
        preferred_element_type=jnp.float32)                  # (bt, tq, tk)
    if masked:  # padded key positions -> -inf before softmax
        key_idx = ki * tk + jax.lax.broadcasted_iota(jnp.int32, s.shape, 2)
        s = jnp.where(key_idx < s_valid, s, -jnp.inf)

    # Online (flash-style) softmax update; all state in f32.
    m_prev = m_scr[...]
    m_new = jnp.maximum(m_prev, jnp.max(s, axis=-1, keepdims=True))
    alpha = jnp.exp(m_prev - m_new)
    p = jnp.exp(s - m_new)
    l_scr[...] = alpha * l_scr[...] + jnp.sum(p, axis=-1, keepdims=True)
    acc_scr[...] = alpha * acc_scr[...] + jax.lax.dot_general(
        p.astype(v.dtype), v,
        dimension_numbers=(((2,), (1,)), ((0,), (0,))),
        preferred_element_type=jnp.float32)
    m_scr[...] = m_new

    # TODO(synk): nn.Dropout(0.1) on the attention weights is identity in eval
    # mode; training-mode stochastic masking is not implemented here.

    @pl.when(ki == pl.num_programs(2) - 1)
    def _finalize():
        inv_l = pl.reciprocal(l_scr[...], approx=True)       # EUP slot
        o_ref[...] = (acc_scr[...] * inv_l).astype(o_ref.dtype)


def _flash_attn_kernel(q_ref, k_ref, v_ref, o_ref, m_scr, l_scr, acc_scr,
                       *, s_valid, masked):
    """Pure flash attention on pre-projected Q/K/V (fallback for huge S*H)."""
    ki = pl.program_id(2)
    tk = k_ref.shape[1]

    @pl.when(ki == 0)
    def _init():
        m_scr[...] = jnp.full_like(m_scr, -jnp.inf)
        l_scr[...] = jnp.zeros_like(l_scr)
        acc_scr[...] = jnp.zeros_like(acc_scr)

    s = jax.lax.dot_general(
        q_ref[...], k_ref[...],
        dimension_numbers=(((2,), (2,)), ((0,), (0,))),
        preferred_element_type=jnp.float32)
    if masked:
        key_idx = ki * tk + jax.lax.broadcasted_iota(jnp.int32, s.shape, 2)
        s = jnp.where(key_idx < s_valid, s, -jnp.inf)

    m_prev = m_scr[...]
    m_new = jnp.maximum(m_prev, jnp.max(s, axis=-1, keepdims=True))
    alpha = jnp.exp(m_prev - m_new)
    p = jnp.exp(s - m_new)
    l_scr[...] = alpha * l_scr[...] + jnp.sum(p, axis=-1, keepdims=True)
    acc_scr[...] = alpha * acc_scr[...] + jax.lax.dot_general(
        p.astype(v_ref.dtype), v_ref[...],
        dimension_numbers=(((2,), (1,)), ((0,), (0,))),
        preferred_element_type=jnp.float32)
    m_scr[...] = m_new

    @pl.when(ki == pl.num_programs(2) - 1)
    def _finalize():
        inv_l = pl.reciprocal(l_scr[...], approx=True)
        o_ref[...] = (acc_scr[...] * inv_l).astype(o_ref.dtype)


# ---------------------------------------------------------------------------
# Wrapper helpers
# ---------------------------------------------------------------------------
def _round_up(n, m):
    return ((n + m - 1) // m) * m


def _largest_divisor(n, cap):
    cap = max(1, min(n, cap))
    for d in range(cap, 0, -1):
        if n % d == 0:
            return d
    return 1


def _device_kind():
    try:
        return jax.devices()[0].device_kind.lower()
    except Exception:
        return ""


def _choose_seq_tile(S, tk_target):
    """Returns (tile, S_pad): lane/sublane-aligned tile and padded seq length."""
    if S <= tk_target:
        t = _round_up(S, 8)          # single tile, sublane-aligned
        return t, t
    best = None
    for c in (512, 256, 128):        # lane-aligned (multiple of 128) candidates
        if c > tk_target:
            continue
        s_pad = _round_up(S, c)
        waste = s_pad - S
        if best is None or (waste, -c) < (best[2], -best[1]):
            best = (c, c, waste) if False else (c, c, waste)
        if best is None or (waste, -c) < (best[2], -best[0]):
            best = (c, s_pad, waste)
    # best = (tile, s_pad, waste); re-derive s_pad for the chosen tile.
    t = best[0]
    return t, _round_up(S, t)


# ---------------------------------------------------------------------------
# Public forward
# ---------------------------------------------------------------------------
def emsa_forward(x, wq, bq, wk, bk, wv, bv, *, compute_dtype=None):
    """EMSA forward (eval mode).

    x: (B, S, H); wq/wk/wv: (H, H) PyTorch (out, in) convention; b*: (H,).
    compute_dtype: pass jnp.bfloat16 to run the MXU at full rate on f32 inputs
    (~2-4x projection throughput, ~1e-3 rel. error); accumulation stays f32.
    """
    B, S, H = x.shape
    out_dtype = x.dtype
    cd = jnp.dtype(compute_dtype) if compute_dtype is not None else jnp.dtype(x.dtype)
    inv_scale = 1.0 / (float(H) ** 0.5)

    kind = _device_kind()
    is_v7 = "v7" in kind
    tk_target = 256 if is_v7 else 512            # smaller key tiles on 64 MiB v7x
    t, S_pad = _choose_seq_tile(S, tk_target)
    masked = S_pad != S

    # Pre-transpose to (in, out) so the kernel does x @ W; fold 1/sqrt(H) into
    # the Q projection.  Weights in compute dtype; biases f32 (add to f32 acc).
    wq_t = (wq.T * inv_scale).astype(cd)
    wk_t = wk.T.astype(cd)
    wv_t = wv.T.astype(cd)
    bq2 = (bq * inv_scale).reshape(1, H).astype(jnp.float32)
    bk2 = bk.reshape(1, H).astype(jnp.float32)
    bv2 = bv.reshape(1, H).astype(jnp.float32)

    x_c = x.astype(cd)
    if masked:
        x_c = jnp.pad(x_c, ((0, 0), (0, S_pad - S), (0, 0)))

    # ---- VMEM budgeting (per review: ~48 MiB usable on v7x, ~100 MiB else) ----
    cd_b = cd.itemsize
    out_b = jnp.dtype(out_dtype).itemsize
    budget = (48 if is_v7 else 100) * (1 << 20)

    def fused_bytes(bt):
        return (3 * H * H * cd_b + 3 * 8 * H * 4           # weights (1-buf) + biases
                + 4 * bt * t * H * cd_b                     # xq + xkv blocks (2-buf)
                + 2 * bt * t * H * out_b                    # out block (2-buf)
                + bt * t * H * cd_b                         # cached Q tile
                + 2 * bt * S_pad * H * cd_b                 # K/V cache
                + bt * t * H * 4 + 2 * bt * t * 128 * 4)    # f32 acc + m/l

    def flash_bytes(bt):
        return (6 * bt * t * H * cd_b + 2 * bt * t * H * out_b
                + bt * t * H * 4 + 2 * bt * t * 128 * 4)

    # Pack several batch elements per step for small S (fill MXU rows,
    # amortize ~0.35 us/step), bounded by the VMEM budget.
    bt = _largest_divisor(B, max(1, 512 // t))
    while bt > 1 and fused_bytes(bt) > budget:
        bt = _largest_divisor(B, bt - 1)
    use_fused = fused_bytes(bt) <= budget
    if not use_fused:                       # split-kernel fallback (option b)
        bt = _largest_divisor(B, max(1, 512 // t))
        while bt > 1 and flash_bytes(bt) > budget:
            bt = _largest_divisor(B, bt - 1)

    nq = S_pad // t
    nk = S_pad // t
    grid = (B // bt, nq, nk)
    est = fused_bytes(bt) if use_fused else flash_bytes(bt)
    vmem_limit = int(min(budget, max(32 << 20, int(est * 1.25) + (2 << 20))))

    def run(tune_buffers):
        if use_fused:
            # Constant weight/bias blocks: single-buffered (index never changes).
            def const_spec(shape):
                if tune_buffers:
                    return pl.BlockSpec(shape, lambda bi, qi, ki: (0, 0),
                                        pipeline_mode=pl.Buffered(1))
                return pl.BlockSpec(shape, lambda bi, qi, ki: (0, 0))

            xq_spec = pl.BlockSpec((bt, t, H), lambda bi, qi, ki: (bi, qi, 0))
            # xkv is only consumed while qi == 0 (cache fill); afterwards the
            # block index is held constant so no redundant HBM fetch is issued.
            xkv_spec = pl.BlockSpec(
                (bt, t, H),
                lambda bi, qi, ki: (bi, jnp.where(qi == 0, ki, nk - 1), 0))
            out_spec = pl.BlockSpec((bt, t, H), lambda bi, qi, ki: (bi, qi, 0))

            kernel = functools.partial(_emsa_fused_kernel,
                                       s_valid=S, masked=masked)
            return pl.pallas_call(
                kernel,
                out_shape=jax.ShapeDtypeStruct((B, S_pad, H), out_dtype),
                grid_spec=pltpu.PrefetchScalarGridSpec(
                    num_scalar_prefetch=0,
                    grid=grid,
                    in_specs=[xq_spec, xkv_spec,
                              const_spec((H, H)), const_spec((1, H)),
                              const_spec((H, H)), const_spec((1, H)),
                              const_spec((H, H)), const_spec((1, H))],
                    out_specs=out_spec,
                    scratch_shapes=[
                        pltpu.VMEM((bt, t, H), cd),          # cached Q tile
                        pltpu.VMEM((bt, S_pad, H), cd),      # projected K cache
                        pltpu.VMEM((bt, S_pad, H), cd),      # projected V cache
                        pltpu.VMEM((bt, t, 1), jnp.float32),  # running max
                        pltpu.VMEM((bt, t, 1), jnp.float32),  # running denom
                        pltpu.VMEM((bt, t, H), jnp.float32),  # output accumulator
                    ]),
                # qi/ki must stay sequential ("arbitrary") because the K/V cache
                # is filled at qi == 0; the batch axis is "parallel" (on v7x this
                # is the axis megacore can shard across the 2 TensorCores).
                compiler_params=pltpu.CompilerParams(
                    dimension_semantics=("parallel", "arbitrary", "arbitrary"),
                    vmem_limit_bytes=vmem_limit),
            )(x_c, x_c, wq_t, bq2, wk_t, bk2, wv_t, bv2)

        # ---- Fallback: projections as plain XLA GEMMs + pure flash attention.
        def proj(w_t, b2):
            y = jax.lax.dot_general(x_c, w_t, (((2,), (0,)), ((), ())),
                                    preferred_element_type=jnp.float32) + b2
            return y.astype(cd)

        q = proj(wq_t, bq2)
        k = proj(wk_t, bk2)
        v = proj(wv_t, bv2)

        kv_mode = {}
        if tune_buffers and not is_v7:
            kv_mode = dict(pipeline_mode=pl.Buffered(3))  # hide ki-stream DMA
        q_spec = pl.BlockSpec((bt, t, H), lambda bi, qi, ki: (bi, qi, 0))
        k_spec = pl.BlockSpec((bt, t, H), lambda bi, qi, ki: (bi, ki, 0), **kv_mode)
        v_spec = pl.BlockSpec((bt, t, H), lambda bi, qi, ki: (bi, ki, 0), **kv_mode)
        out_spec = pl.BlockSpec((bt, t, H), lambda bi, qi, ki: (bi, qi, 0))

        kernel = functools.partial(_flash_attn_kernel, s_valid=S, masked=masked)
        return pl.pallas_call(
            kernel,
            out_shape=jax.ShapeDtypeStruct((B, S_pad, H), out_dtype),
            grid_spec=pltpu.PrefetchScalarGridSpec(
                num_scalar_prefetch=0,
                grid=grid,
                in_specs=[q_spec, k_spec, v_spec],
                out_specs=out_spec,
                scratch_shapes=[
                    pltpu.VMEM((bt, t, 1), jnp.float32),
                    pltpu.VMEM((bt, t, 1), jnp.float32),
                    pltpu.VMEM((bt, t, H), jnp.float32),
                ]),
            compiler_params=pltpu.CompilerParams(
                dimension_semantics=("parallel", "parallel", "arbitrary"),
                vmem_limit_bytes=vmem_limit),
        )(q, k, v)

    try:
        out = jax.block_until_ready(run(True))
    except Exception:
        # Older JAX without BlockSpec pipeline_mode / pl.Buffered: retry with
        # default double-buffering (same math, slightly higher VMEM use).
        out = run(False)

    if masked:
        out = out[:, :S, :]
    return out


# ---------------------------------------------------------------------------
# Pure-JAX reference (mirrors the PyTorch forward in eval mode)
# ---------------------------------------------------------------------------
def emsa_reference(x, wq, bq, wk, bk, wv, bv):
    H = x.shape[-1]
    q = jnp.einsum("bsh,oh->bso", x, wq) + bq
    k = jnp.einsum("bsh,oh->bso", x, wk) + bk
    v = jnp.einsum("bsh,oh->bso", x, wv) + bv
    scores = jnp.einsum("bqh,bkh->bqk", q, k) / (H ** 0.5)
    attn = jax.nn.softmax(scores, axis=-1)
    return jnp.einsum("bqk,bkh->bqh", attn, v)


if __name__ == "__main__":
    B, S, H = 2, 8, 32
    key = jax.random.PRNGKey(0)
    kx, kq, kbq, kk, kbk, kv, kbv = jax.random.split(key, 7)

    # Deterministic synthetic parameters (PyTorch Linear shapes: W (H,H), b (H,)).
    bound = 1.0 / math.sqrt(H)
    x = jax.random.normal(kx, (B, S, H), dtype=jnp.float32)
    wq = jax.random.uniform(kq, (H, H), jnp.float32, -bound, bound)
    bq = jax.random.uniform(kbq, (H,), jnp.float32, -bound, bound)
    wk = jax.random.uniform(kk, (H, H), jnp.float32, -bound, bound)
    bk = jax.random.uniform(kbk, (H,), jnp.float32, -bound, bound)
    wv = jax.random.uniform(kv, (H, H), jnp.float32, -bound, bound)
    bv = jax.random.uniform(kbv, (H,), jnp.float32, -bound, bound)

    out = emsa_forward(x, wq, bq, wk, bk, wv, bv)
    out = jax.block_until_ready(out)

    ref = emsa_reference(x, wq, bq, wk, bk, wv, bv)
    assert out.shape == (B, S, H)
    # Tolerance covers approx reciprocal + MXU accumulation order.
    assert jnp.allclose(out, ref, atol=1e-2, rtol=1e-2), "mismatch vs reference"

    print("KERNEL_OK")
</pallas_src>

<mosaic_0001>
module attributes {stable_mosaic.version = 11 : i64} {
  func.func @_emsa_fused_kernel(%arg0: i32, %arg1: i32, %arg2: i32, %arg3: memref<2x8x32xf32, #tpu.memory_space<vmem>>, %arg4: memref<2x8x32xf32, #tpu.memory_space<vmem>>, %arg5: memref<32x32xf32, #tpu.memory_space<vmem>>, %arg6: memref<1x32xf32, #tpu.memory_space<vmem>>, %arg7: memref<32x32xf32, #tpu.memory_space<vmem>>, %arg8: memref<1x32xf32, #tpu.memory_space<vmem>>, %arg9: memref<32x32xf32, #tpu.memory_space<vmem>>, %arg10: memref<1x32xf32, #tpu.memory_space<vmem>>, %arg11: memref<2x8x32xf32, #tpu.memory_space<vmem>>, %arg12: memref<2x8x32xf32, #tpu.memory_space<vmem>>, %arg13: memref<2x8x32xf32, #tpu.memory_space<vmem>>, %arg14: memref<2x8x32xf32, #tpu.memory_space<vmem>>, %arg15: memref<2x8x1xf32, #tpu.memory_space<vmem>>, %arg16: memref<2x8x1xf32, #tpu.memory_space<vmem>>, %arg17: memref<2x8x32xf32, #tpu.memory_space<vmem>>) attributes {dimension_semantics = [#tpu.dimension_semantics<parallel>, #tpu.dimension_semantics<arbitrary>, #tpu.dimension_semantics<arbitrary>], iteration_bounds = array<i64: 1, 1, 1>, scalar_prefetch = 0 : i64, scratch_operands = 6 : i64, tpu.core_type = #tpu.core_type<tc>, window_params = [{transform_indices = @transform_0, window_bounds = array<i64: 2, 8, 32>}, {transform_indices = @transform_1, window_bounds = array<i64: 2, 8, 32>}, {pipeline_mode = #tpu.pipeline_mode<synchronous>, transform_indices = @transform_2, window_bounds = array<i64: 32, 32>}, {pipeline_mode = #tpu.pipeline_mode<synchronous>, transform_indices = @transform_3, window_bounds = array<i64: 1, 32>}, {pipeline_mode = #tpu.pipeline_mode<synchronous>, transform_indices = @transform_4, window_bounds = array<i64: 32, 32>}, {pipeline_mode = #tpu.pipeline_mode<synchronous>, transform_indices = @transform_5, window_bounds = array<i64: 1, 32>}, {pipeline_mode = #tpu.pipeline_mode<synchronous>, transform_indices = @transform_6, window_bounds = array<i64: 32, 32>}, {pipeline_mode = #tpu.pipeline_mode<synchronous>, transform_indices = @transform_7, window_bounds = array<i64: 1, 32>}, {transform_indices = @transform_8, window_bounds = array<i64: 2, 8, 32>}]} {
    %c8_i32 = arith.constant 8 : i32
    %0 = arith.muli %arg2, %c8_i32 : i32
    %1 = tpu.assume_multiple %0, 8 : i32
    %c0_i32 = arith.constant 0 : i32
    %2 = arith.cmpi eq, %arg1, %c0_i32 : i32
    %3 = arith.extui %2 : i1 to i32
    %c0_i32_0 = arith.constant 0 : i32
    %4 = arith.cmpi ne, %3, %c0_i32_0 : i32
    scf.if %4 {
      %c0_32 = arith.constant 0 : index
      %c0_33 = arith.constant 0 : index
      %c0_34 = arith.constant 0 : index
      %39 = vector.load %arg4[%c0_32, %c0_33, %c0_34] : memref<2x8x32xf32, #tpu.memory_space<vmem>>, vector<2x8x32xf32>
      %40 = vector.shape_cast %39 : vector<2x8x32xf32> to vector<16x32xf32>
      %c0_35 = arith.constant 0 : index
      %c0_36 = arith.constant 0 : index
      %41 = vector.load %arg7[%c0_35, %c0_36] : memref<32x32xf32, #tpu.memory_space<vmem>>, vector<32x32xf32>
      %cst_37 = arith.constant dense<0.000000e+00> : vector<16x32xf32>
      %42 = tpu.matmul %40, %41, %cst_37 {dimension_numbers = #tpu.dot_dimension_numbers<[1], [0], [0], [1], [0, 0, 1, 1], [], []>} : vector<16x32xf32>, vector<32x32xf32>, vector<16x32xf32> -> vector<16x32xf32>
      %c0_38 = arith.constant 0 : index
      %c0_39 = arith.constant 0 : index
      %43 = vector.load %arg8[%c0_38, %c0_39] : memref<1x32xf32, #tpu.memory_space<vmem>>, vector<1x32xf32>
      %44 = vector.broadcast %43 : vector<1x32xf32> to vector<16x32xf32>
      %45 = arith.addf %42, %44 : vector<16x32xf32>
      %c0_40 = arith.constant 0 : index
      %c0_41 = arith.constant 0 : index
      %46 = vector.load %arg9[%c0_40, %c0_41] : memref<32x32xf32, #tpu.memory_space<vmem>>, vector<32x32xf32>
      %cst_42 = arith.constant dense<0.000000e+00> : vector<16x32xf32>
      %47 = tpu.matmul %40, %46, %cst_42 {dimension_numbers = #tpu.dot_dimension_numbers<[1], [0], [0], [1], [0, 0, 1, 1], [], []>} : vector<16x32xf32>, vector<32x32xf32>, vector<16x32xf32> -> vector<16x32xf32>
      %c0_43 = arith.constant 0 : index
      %c0_44 = arith.constant 0 : index
      %48 = vector.load %arg10[%c0_43, %c0_44] : memref<1x32xf32, #tpu.memory_space<vmem>>, vector<1x32xf32>
      %49 = vector.broadcast %48 : vector<1x32xf32> to vector<16x32xf32>
      %50 = arith.addf %47, %49 : vector<16x32xf32>
      %51 = vector.shape_cast %45 : vector<16x32xf32> to vector<2x8x32xf32>
      %c0_45 = arith.constant 0 : index
      %52 = arith.index_cast %1 : i32 to index
      %c0_46 = arith.constant 0 : index
      %53 = vector.load %arg13[%c0_45, %52, %c0_46] : memref<2x8x32xf32, #tpu.memory_space<vmem>>, vector<2x8x32xf32>
      tpu.vector_store %arg13[%c0_45, %52, %c0_46], %51 {strides = array<i32>} : memref<2x8x32xf32, #tpu.memory_space<vmem>>, vector<2x8x32xf32>,
      %54 = vector.shape_cast %50 : vector<16x32xf32> to vector<2x8x32xf32>
      %c0_47 = arith.constant 0 : index
      %55 = arith.index_cast %1 : i32 to index
      %c0_48 = arith.constant 0 : index
      %56 = vector.load %arg14[%c0_47, %55, %c0_48] : memref<2x8x32xf32, #tpu.memory_space<vmem>>, vector<2x8x32xf32>
      tpu.vector_store %arg14[%c0_47, %55, %c0_48], %54 {strides = array<i32>} : memref<2x8x32xf32, #tpu.memory_space<vmem>>, vector<2x8x32xf32>,
    } else {
    }
    %c0_i32_1 = arith.constant 0 : i32
    %5 = arith.cmpi eq, %arg2, %c0_i32_1 : i32
    %6 = arith.extui %5 : i1 to i32
    %c0_i32_2 = arith.constant 0 : i32
    %7 = arith.cmpi ne, %6, %c0_i32_2 : i32
    scf.if %7 {
      %c0_32 = arith.constant 0 : index
      %c0_33 = arith.constant 0 : index
      %c0_34 = arith.constant 0 : index
      %39 = vector.load %arg3[%c0_32, %c0_33, %c0_34] : memref<2x8x32xf32, #tpu.memory_space<vmem>>, vector<2x8x32xf32>
      %40 = vector.shape_cast %39 : vector<2x8x32xf32> to vector<16x32xf32>
      %c0_35 = arith.constant 0 : index
      %c0_36 = arith.constant 0 : index
      %41 = vector.load %arg5[%c0_35, %c0_36] : memref<32x32xf32, #tpu.memory_space<vmem>>, vector<32x32xf32>
      %cst_37 = arith.constant dense<0.000000e+00> : vector<16x32xf32>
      %42 = tpu.matmul %40, %41, %cst_37 {dimension_numbers = #tpu.dot_dimension_numbers<[1], [0], [0], [1], [0, 0, 1, 1], [], []>} : vector<16x32xf32>, vector<32x32xf32>, vector<16x32xf32> -> vector<16x32xf32>
      %c0_38 = arith.constant 0 : index
      %c0_39 = arith.constant 0 : index
      %43 = vector.load %arg6[%c0_38, %c0_39] : memref<1x32xf32, #tpu.memory_space<vmem>>, vector<1x32xf32>
      %44 = vector.broadcast %43 : vector<1x32xf32> to vector<16x32xf32>
      %45 = arith.addf %42, %44 : vector<16x32xf32>
      %46 = vector.shape_cast %45 : vector<16x32xf32> to vector<2x8x32xf32>
      %c0_40 = arith.constant 0 : index
      %c0_41 = arith.constant 0 : index
      %c0_42 = arith.constant 0 : index
      %47 = vector.load %arg12[%c0_40, %c0_41, %c0_42] : memref<2x8x32xf32, #tpu.memory_space<vmem>>, vector<2x8x32xf32>
      tpu.vector_store %arg12[%c0_40, %c0_41, %c0_42], %46 {strides = array<i32>} : memref<2x8x32xf32, #tpu.memory_space<vmem>>, vector<2x8x32xf32>,
      %cst_43 = arith.constant 0xFF800000 : f32
      %48 = vector.broadcast %cst_43 : f32 to vector<2x8x1xf32>
      %c0_44 = arith.constant 0 : index
      %c0_45 = arith.constant 0 : index
      %c0_46 = arith.constant 0 : index
      %49 = vector.load %arg15[%c0_44, %c0_45, %c0_46] : memref<2x8x1xf32, #tpu.memory_space<vmem>>, vector<2x8x1xf32>
      tpu.vector_store %arg15[%c0_44, %c0_45, %c0_46], %48 {strides = array<i32>} : memref<2x8x1xf32, #tpu.memory_space<vmem>>, vector<2x8x1xf32>,
      %cst_47 = arith.constant 0.000000e+00 : f32
      %50 = vector.broadcast %cst_47 : f32 to vector<2x8x1xf32>
      %c0_48 = arith.constant 0 : index
      %c0_49 = arith.constant 0 : index
      %c0_50 = arith.constant 0 : index
      %51 = vector.load %arg16[%c0_48, %c0_49, %c0_50] : memref<2x8x1xf32, #tpu.memory_space<vmem>>, vector<2x8x1xf32>
      tpu.vector_store %arg16[%c0_48, %c0_49, %c0_50], %50 {strides = array<i32>} : memref<2x8x1xf32, #tpu.memory_space<vmem>>, vector<2x8x1xf32>,
      %cst_51 = arith.constant 0.000000e+00 : f32
      %52 = vector.broadcast %cst_51 : f32 to vector<2x8x32xf32>
      %c0_52 = arith.constant 0 : index
      %c0_53 = arith.constant 0 : index
      %c0_54 = arith.constant 0 : index
      %53 = vector.load %arg17[%c0_52, %c0_53, %c0_54] : memref<2x8x32xf32, #tpu.memory_space<vmem>>, vector<2x8x32xf32>
      tpu.vector_store %arg17[%c0_52, %c0_53, %c0_54], %52 {strides = array<i32>} : memref<2x8x32xf32, #tpu.memory_space<vmem>>, vector<2x8x32xf32>,
    } else {
    }
    %c0 = arith.constant 0 : index
    %8 = arith.index_cast %1 : i32 to index
    %c0_3 = arith.constant 0 : index
    %9 = vector.load %arg13[%c0, %8, %c0_3] : memref<2x8x32xf32, #tpu.memory_space<vmem>>, vector<2x8x32xf32>
    %c0_4 = arith.constant 0 : index
    %10 = arith.index_cast %1 : i32 to index
    %c0_5 = arith.constant 0 : index
    %11 = vector.load %arg14[%c0_4, %10, %c0_5] : memref<2x8x32xf32, #tpu.memory_space<vmem>>, vector<2x8x32xf32>
    %c0_6 = arith.constant 0 : index
    %c0_7 = arith.constant 0 : index
    %c0_8 = arith.constant 0 : index
    %12 = vector.load %arg12[%c0_6, %c0_7, %c0_8] : memref<2x8x32xf32, #tpu.memory_space<vmem>>, vector<2x8x32xf32>
    %cst = arith.constant dense<0.000000e+00> : vector<2x8x8xf32>
    %13 = tpu.matmul %12, %9, %cst {dimension_numbers = #tpu.dot_dimension_numbers<[2], [2], [1], [1], [0, 0, 0, 1, 1, 1], [0], [0]>} : vector<2x8x32xf32>, vector<2x8x32xf32>, vector<2x8x8xf32> -> vector<2x8x8xf32>
    %c0_9 = arith.constant 0 : index
    %c0_10 = arith.constant 0 : index
    %c0_11 = arith.constant 0 : index
    %14 = vector.load %arg15[%c0_9, %c0_10, %c0_11] : memref<2x8x1xf32, #tpu.memory_space<vmem>>, vector<2x8x1xf32>
    %cst_12 = arith.constant dense<0xFF800000> : vector<2x8xf32>
    %15 = vector.multi_reduction <maximumf>, %13, %cst_12 [2] : vector<2x8x8xf32> to vector<2x8xf32>
    %16 = vector.shape_cast %15 : vector<2x8xf32> to vector<2x8x1xf32>
    %17 = arith.maximumf %14, %16 : vector<2x8x1xf32>
    %18 = arith.subf %14, %17 : vector<2x8x1xf32>
    %19 = math.exp %18 : vector<2x8x1xf32>
    %20 = vector.broadcast %17 : vector<2x8x1xf32> to vector<2x8x8xf32>
    %21 = arith.subf %13, %20 : vector<2x8x8xf32>
    %22 = math.exp %21 : vector<2x8x8xf32>
    %c0_13 = arith.constant 0 : index
    %c0_14 = arith.constant 0 : index
    %c0_15 = arith.constant 0 : index
    %23 = vector.load %arg16[%c0_13, %c0_14, %c0_15] : memref<2x8x1xf32, #tpu.memory_space<vmem>>, vector<2x8x1xf32>
    %24 = arith.mulf %19, %23 : vector<2x8x1xf32>
    %cst_16 = arith.constant dense<0.000000e+00> : vector<2x8xf32>
    %25 = vector.multi_reduction <add>, %22, %cst_16 [2] : vector<2x8x8xf32> to vector<2x8xf32>
    %26 = vector.shape_cast %25 : vector<2x8xf32> to vector<2x8x1xf32>
    %27 = arith.addf %24, %26 : vector<2x8x1xf32>
    %c0_17 = arith.constant 0 : index
    %c0_18 = arith.constant 0 : index
    %c0_19 = arith.constant 0 : index
    %28 = vector.load %arg16[%c0_17, %c0_18, %c0_19] : memref<2x8x1xf32, #tpu.memory_space<vmem>>, vector<2x8x1xf32>
    tpu.vector_store %arg16[%c0_17, %c0_18, %c0_19], %27 {strides = array<i32>} : memref<2x8x1xf32, #tpu.memory_space<vmem>>, vector<2x8x1xf32>,
    %c0_20 = arith.constant 0 : index
    %c0_21 = arith.constant 0 : index
    %c0_22 = arith.constant 0 : index
    %29 = vector.load %arg17[%c0_20, %c0_21, %c0_22] : memref<2x8x32xf32, #tpu.memory_space<vmem>>, vector<2x8x32xf32>
    %30 = vector.broadcast %19 : vector<2x8x1xf32> to vector<2x8x32xf32>
    %31 = arith.mulf %30, %29 : vector<2x8x32xf32>
    %cst_23 = arith.constant dense<0.000000e+00> : vector<2x8x32xf32>
    %32 = tpu.matmul %22, %11, %cst_23 {dimension_numbers = #tpu.dot_dimension_numbers<[2], [1], [1], [2], [0, 0, 0, 1, 1, 2], [0], [0]>} : vector<2x8x8xf32>, vector<2x8x32xf32>, vector<2x8x32xf32> -> vector<2x8x32xf32>
    %33 = arith.addf %31, %32 : vector<2x8x32xf32>
    %c0_24 = arith.constant 0 : index
    %c0_25 = arith.constant 0 : index
    %c0_26 = arith.constant 0 : index
    %34 = vector.load %arg17[%c0_24, %c0_25, %c0_26] : memref<2x8x32xf32, #tpu.memory_space<vmem>>, vector<2x8x32xf32>
    tpu.vector_store %arg17[%c0_24, %c0_25, %c0_26], %33 {strides = array<i32>} : memref<2x8x32xf32, #tpu.memory_space<vmem>>, vector<2x8x32xf32>,
    %c0_27 = arith.constant 0 : index
    %c0_28 = arith.constant 0 : index
    %c0_29 = arith.constant 0 : index
    %35 = vector.load %arg15[%c0_27, %c0_28, %c0_29] : memref<2x8x1xf32, #tpu.memory_space<vmem>>, vector<2x8x1xf32>
    tpu.vector_store %arg15[%c0_27, %c0_28, %c0_29], %17 {strides = array<i32>} : memref<2x8x1xf32, #tpu.memory_space<vmem>>, vector<2x8x1xf32>,
    %c0_i32_30 = arith.constant 0 : i32
    %36 = arith.cmpi eq, %arg2, %c0_i32_30 : i32
    %37 = arith.extui %36 : i1 to i32
    %c0_i32_31 = arith.constant 0 : i32
    %38 = arith.cmpi ne, %37, %c0_i32_31 : i32
    scf.if %38 {
      %c0_32 = arith.constant 0 : index
      %c0_33 = arith.constant 0 : index
      %c0_34 = arith.constant 0 : index
      %39 = vector.load %arg16[%c0_32, %c0_33, %c0_34] : memref<2x8x1xf32, #tpu.memory_space<vmem>>, vector<2x8x1xf32>
      %40 = tpu.reciprocal %39 {approx = true} : vector<2x8x1xf32> -> vector<2x8x1xf32>
      %c0_35 = arith.constant 0 : index
      %c0_36 = arith.constant 0 : index
      %c0_37 = arith.constant 0 : index
      %41 = vector.load %arg17[%c0_35, %c0_36, %c0_37] : memref<2x8x32xf32, #tpu.memory_space<vmem>>, vector<2x8x32xf32>
      %42 = vector.broadcast %40 : vector<2x8x1xf32> to vector<2x8x32xf32>
      %43 = arith.mulf %41, %42 : vector<2x8x32xf32>
      %c0_38 = arith.constant 0 : index
      %c0_39 = arith.constant 0 : index
      %c0_40 = arith.constant 0 : index
      %44 = vector.load %arg11[%c0_38, %c0_39, %c0_40] : memref<2x8x32xf32, #tpu.memory_space<vmem>>, vector<2x8x32xf32>
      tpu.vector_store %arg11[%c0_38, %c0_39, %c0_40], %43 {strides = array<i32>} : memref<2x8x32xf32, #tpu.memory_space<vmem>>, vector<2x8x32xf32>,
    } else {
    }
    return
  }
  func.func @transform_0(%arg0: i32, %arg1: i32, %arg2: i32) -> (i32, i32, i32) {
    %c0_i32 = arith.constant 0 : i32
    %c0_i32_0 = arith.constant 0 : i32
    return %arg0, %arg1, %c0_i32 : i32, i32, i32
  }
  func.func @transform_1(%arg0: i32, %arg1: i32, %arg2: i32) -> (i32, i32, i32) {
    %c0_i32 = arith.constant 0 : i32
    %0 = arith.cmpi eq, %arg1, %c0_i32 : i32
    %c0_i32_0 = arith.constant 0 : i32
    %1 = arith.select %0, %arg2, %c0_i32_0 : i32
    %c0_i32_1 = arith.constant 0 : i32
    %c0_i32_2 = arith.constant 0 : i32
    return %arg0, %1, %c0_i32_1 : i32, i32, i32
  }
  func.func @transform_2(%arg0: i32, %arg1: i32, %arg2: i32) -> (i32, i32) {
    %c0_i32 = arith.constant 0 : i32
    %c0_i32_0 = arith.constant 0 : i32
    %c0_i32_1 = arith.constant 0 : i32
    return %c0_i32, %c0_i32_0 : i32, i32
  }
  func.func @transform_3(%arg0: i32, %arg1: i32, %arg2: i32) -> (i32, i32) {
    %c0_i32 = arith.constant 0 : i32
    %c0_i32_0 = arith.constant 0 : i32
    %c0_i32_1 = arith.constant 0 : i32
    return %c0_i32, %c0_i32_0 : i32, i32
  }
  func.func @transform_4(%arg0: i32, %arg1: i32, %arg2: i32) -> (i32, i32) {
    %c0_i32 = arith.constant 0 : i32
    %c0_i32_0 = arith.constant 0 : i32
    %c0_i32_1 = arith.constant 0 : i32
    return %c0_i32, %c0_i32_0 : i32, i32
  }
  func.func @transform_5(%arg0: i32, %arg1: i32, %arg2: i32) -> (i32, i32) {
    %c0_i32 = arith.constant 0 : i32
    %c0_i32_0 = arith.constant 0 : i32
    %c0_i32_1 = arith.constant 0 : i32
    return %c0_i32, %c0_i32_0 : i32, i32
  }
  func.func @transform_6(%arg0: i32, %arg1: i32, %arg2: i32) -> (i32, i32) {
    %c0_i32 = arith.constant 0 : i32
    %c0_i32_0 = arith.constant 0 : i32
    %c0_i32_1 = arith.constant 0 : i32
    return %c0_i32, %c0_i32_0 : i32, i32
  }
  func.func @transform_7(%arg0: i32, %arg1: i32, %arg2: i32) -> (i32, i32) {
    %c0_i32 = arith.constant 0 : i32
    %c0_i32_0 = arith.constant 0 : i32
    %c0_i32_1 = arith.constant 0 : i32
    return %c0_i32, %c0_i32_0 : i32, i32
  }
  func.func @transform_8(%arg0: i32, %arg1: i32, %arg2: i32) -> (i32, i32, i32) {
    %c0_i32 = arith.constant 0 : i32
    %c0_i32_0 = arith.constant 0 : i32
    return %arg0, %arg1, %c0_i32 : i32, i32, i32
  }
}

module attributes {stable_mosaic.version = 11 : i64} {
  func.func @_emsa_fused_kernel(%arg0: i32, %arg1: i32, %arg2: i32, %arg3: memref<2x8x32xf32, #tpu.memory_space<vmem>>, %arg4: memref<2x8x32xf32, #tpu.memory_space<vmem>>, %arg5: memref<32x32xf32, #tpu.memory_space<vmem>>, %arg6: memref<1x32xf32, #tpu.memory_space<vmem>>, %arg7: memref<32x32xf32, #tpu.memory_space<vmem>>, %arg8: memref<1x32xf32, #tpu.memory_space<vmem>>, %arg9: memref<32x32xf32, #tpu.memory_space<vmem>>, %arg10: memref<1x32xf32, #tpu.memory_space<vmem>>, %arg11: memref<2x8x32xf32, #tpu.memory_space<vmem>>, %arg12: memref<2x8x32xf32, #tpu.memory_space<vmem>>, %arg13: memref<2x8x32xf32, #tpu.memory_space<vmem>>, %arg14: memref<2x8x32xf32, #tpu.memory_space<vmem>>, %arg15: memref<2x8x1xf32, #tpu.memory_space<vmem>>, %arg16: memref<2x8x1xf32, #tpu.memory_space<vmem>>, %arg17: memref<2x8x32xf32, #tpu.memory_space<vmem>>) attributes {dimension_semantics = [#tpu.dimension_semantics<parallel>, #tpu.dimension_semantics<arbitrary>, #tpu.dimension_semantics<arbitrary>], iteration_bounds = array<i64: 1, 1, 1>, scalar_prefetch = 0 : i64, scratch_operands = 6 : i64, tpu.core_type = #tpu.core_type<tc>, window_params = [{transform_indices = @transform_0, window_bounds = array<i64: 2, 8, 32>}, {transform_indices = @transform_1, window_bounds = array<i64: 2, 8, 32>}, {pipeline_mode = #tpu.pipeline_mode<synchronous>, transform_indices = @transform_2, window_bounds = array<i64: 32, 32>}, {pipeline_mode = #tpu.pipeline_mode<synchronous>, transform_indices = @transform_3, window_bounds = array<i64: 1, 32>}, {pipeline_mode = #tpu.pipeline_mode<synchronous>, transform_indices = @transform_4, window_bounds = array<i64: 32, 32>}, {pipeline_mode = #tpu.pipeline_mode<synchronous>, transform_indices = @transform_5, window_bounds = array<i64: 1, 32>}, {pipeline_mode = #tpu.pipeline_mode<synchronous>, transform_indices = @transform_6, window_bounds = array<i64: 32, 32>}, {pipeline_mode = #tpu.pipeline_mode<synchronous>, transform_indices = @transform_7, window_bounds = array<i64: 1, 32>}, {transform_indices = @transform_8, window_bounds = array<i64: 2, 8, 32>}]} {
    %c8_i32 = arith.constant 8 : i32
    %0 = arith.muli %arg2, %c8_i32 : i32
    %1 = tpu.assume_multiple %0, 8 : i32
    %c0_i32 = arith.constant 0 : i32
    %2 = arith.cmpi eq, %arg1, %c0_i32 : i32
    %3 = arith.extui %2 : i1 to i32
    %c0_i32_0 = arith.constant 0 : i32
    %4 = arith.cmpi ne, %3, %c0_i32_0 : i32
    scf.if %4 {
      %c0_32 = arith.constant 0 : index
      %c0_33 = arith.constant 0 : index
      %c0_34 = arith.constant 0 : index
      %39 = vector.load %arg4[%c0_32, %c0_33, %c0_34] : memref<2x8x32xf32, #tpu.memory_space<vmem>>, vector<2x8x32xf32>
      %40 = vector.shape_cast %39 : vector<2x8x32xf32> to vector<16x32xf32>
      %c0_35 = arith.constant 0 : index
      %c0_36 = arith.constant 0 : index
      %41 = vector.load %arg7[%c0_35, %c0_36] : memref<32x32xf32, #tpu.memory_space<vmem>>, vector<32x32xf32>
      %cst_37 = arith.constant dense<0.000000e+00> : vector<16x32xf32>
      %42 = tpu.matmul %40, %41, %cst_37 {dimension_numbers = #tpu.dot_dimension_numbers<[1], [0], [0], [1], [0, 0, 1, 1], [], []>} : vector<16x32xf32>, vector<32x32xf32>, vector<16x32xf32> -> vector<16x32xf32>
      %c0_38 = arith.constant 0 : index
      %c0_39 = arith.constant 0 : index
      %43 = vector.load %arg8[%c0_38, %c0_39] : memref<1x32xf32, #tpu.memory_space<vmem>>, vector<1x32xf32>
      %44 = vector.broadcast %43 : vector<1x32xf32> to vector<16x32xf32>
      %45 = arith.addf %42, %44 : vector<16x32xf32>
      %c0_40 = arith.constant 0 : index
      %c0_41 = arith.constant 0 : index
      %46 = vector.load %arg9[%c0_40, %c0_41] : memref<32x32xf32, #tpu.memory_space<vmem>>, vector<32x32xf32>
      %cst_42 = arith.constant dense<0.000000e+00> : vector<16x32xf32>
      %47 = tpu.matmul %40, %46, %cst_42 {dimension_numbers = #tpu.dot_dimension_numbers<[1], [0], [0], [1], [0, 0, 1, 1], [], []>} : vector<16x32xf32>, vector<32x32xf32>, vector<16x32xf32> -> vector<16x32xf32>
      %c0_43 = arith.constant 0 : index
      %c0_44 = arith.constant 0 : index
      %48 = vector.load %arg10[%c0_43, %c0_44] : memref<1x32xf32, #tpu.memory_space<vmem>>, vector<1x32xf32>
      %49 = vector.broadcast %48 : vector<1x32xf32> to vector<16x32xf32>
      %50 = arith.addf %47, %49 : vector<16x32xf32>
      %51 = vector.shape_cast %45 : vector<16x32xf32> to vector<2x8x32xf32>
      %c0_45 = arith.constant 0 : index
      %52 = arith.index_cast %1 : i32 to index
      %c0_46 = arith.constant 0 : index
      %53 = vector.load %arg13[%c0_45, %52, %c0_46] : memref<2x8x32xf32, #tpu.memory_space<vmem>>, vector<2x8x32xf32>
      tpu.vector_store %arg13[%c0_45, %52, %c0_46], %51 {strides = array<i32>} : memref<2x8x32xf32, #tpu.memory_space<vmem>>, vector<2x8x32xf32>,
      %54 = vector.shape_cast %50 : vector<16x32xf32> to vector<2x8x32xf32>
      %c0_47 = arith.constant 0 : index
      %55 = arith.index_cast %1 : i32 to index
      %c0_48 = arith.constant 0 : index
      %56 = vector.load %arg14[%c0_47, %55, %c0_48] : memref<2x8x32xf32, #tpu.memory_space<vmem>>, vector<2x8x32xf32>
      tpu.vector_store %arg14[%c0_47, %55, %c0_48], %54 {strides = array<i32>} : memref<2x8x32xf32, #tpu.memory_space<vmem>>, vector<2x8x32xf32>,
    } else {
    }
    %c0_i32_1 = arith.constant 0 : i32
    %5 = arith.cmpi eq, %arg2, %c0_i32_1 : i32
    %6 = arith.extui %5 : i1 to i32
    %c0_i32_2 = arith.constant 0 : i32
    %7 = arith.cmpi ne, %6, %c0_i32_2 : i32
    scf.if %7 {
      %c0_32 = arith.constant 0 : index
      %c0_33 = arith.constant 0 : index
      %c0_34 = arith.constant 0 : index
      %39 = vector.load %arg3[%c0_32, %c0_33, %c0_34] : memref<2x8x32xf32, #tpu.memory_space<vmem>>, vector<2x8x32xf32>
      %40 = vector.shape_cast %39 : vector<2x8x32xf32> to vector<16x32xf32>
      %c0_35 = arith.constant 0 : index
      %c0_36 = arith.constant 0 : index
      %41 = vector.load %arg5[%c0_35, %c0_36] : memref<32x32xf32, #tpu.memory_space<vmem>>, vector<32x32xf32>
      %cst_37 = arith.constant dense<0.000000e+00> : vector<16x32xf32>
      %42 = tpu.matmul %40, %41, %cst_37 {dimension_numbers = #tpu.dot_dimension_numbers<[1], [0], [0], [1], [0, 0, 1, 1], [], []>} : vector<16x32xf32>, vector<32x32xf32>, vector<16x32xf32> -> vector<16x32xf32>
      %c0_38 = arith.constant 0 : index
      %c0_39 = arith.constant 0 : index
      %43 = vector.load %arg6[%c0_38, %c0_39] : memref<1x32xf32, #tpu.memory_space<vmem>>, vector<1x32xf32>
      %44 = vector.broadcast %43 : vector<1x32xf32> to vector<16x32xf32>
      %45 = arith.addf %42, %44 : vector<16x32xf32>
      %46 = vector.shape_cast %45 : vector<16x32xf32> to vector<2x8x32xf32>
      %c0_40 = arith.constant 0 : index
      %c0_41 = arith.constant 0 : index
      %c0_42 = arith.constant 0 : index
      %47 = vector.load %arg12[%c0_40, %c0_41, %c0_42] : memref<2x8x32xf32, #tpu.memory_space<vmem>>, vector<2x8x32xf32>
      tpu.vector_store %arg12[%c0_40, %c0_41, %c0_42], %46 {strides = array<i32>} : memref<2x8x32xf32, #tpu.memory_space<vmem>>, vector<2x8x32xf32>,
      %cst_43 = arith.constant 0xFF800000 : f32
      %48 = vector.broadcast %cst_43 : f32 to vector<2x8x1xf32>
      %c0_44 = arith.constant 0 : index
      %c0_45 = arith.constant 0 : index
      %c0_46 = arith.constant 0 : index
      %49 = vector.load %arg15[%c0_44, %c0_45, %c0_46] : memref<2x8x1xf32, #tpu.memory_space<vmem>>, vector<2x8x1xf32>
      tpu.vector_store %arg15[%c0_44, %c0_45, %c0_46], %48 {strides = array<i32>} : memref<2x8x1xf32, #tpu.memory_space<vmem>>, vector<2x8x1xf32>,
      %cst_47 = arith.constant 0.000000e+00 : f32
      %50 = vector.broadcast %cst_47 : f32 to vector<2x8x1xf32>
      %c0_48 = arith.constant 0 : index
      %c0_49 = arith.constant 0 : index
      %c0_50 = arith.constant 0 : index
      %51 = vector.load %arg16[%c0_48, %c0_49, %c0_50] : memref<2x8x1xf32, #tpu.memory_space<vmem>>, vector<2x8x1xf32>
      tpu.vector_store %arg16[%c0_48, %c0_49, %c0_50], %50 {strides = array<i32>} : memref<2x8x1xf32, #tpu.memory_space<vmem>>, vector<2x8x1xf32>,
      %cst_51 = arith.constant 0.000000e+00 : f32
      %52 = vector.broadcast %cst_51 : f32 to vector<2x8x32xf32>
      %c0_52 = arith.constant 0 : index
      %c0_53 = arith.constant 0 : index
      %c0_54 = arith.constant 0 : index
      %53 = vector.load %arg17[%c0_52, %c0_53, %c0_54] : memref<2x8x32xf32, #tpu.memory_space<vmem>>, vector<2x8x32xf32>
      tpu.vector_store %arg17[%c0_52, %c0_53, %c0_54], %52 {strides = array<i32>} : memref<2x8x32xf32, #tpu.memory_space<vmem>>, vector<2x8x32xf32>,
    } else {
    }
    %c0 = arith.constant 0 : index
    %8 = arith.index_cast %1 : i32 to index
    %c0_3 = arith.constant 0 : index
    %9 = vector.load %arg13[%c0, %8, %c0_3] : memref<2x8x32xf32, #tpu.memory_space<vmem>>, vector<2x8x32xf32>
    %c0_4 = arith.constant 0 : index
    %10 = arith.index_cast %1 : i32 to index
    %c0_5 = arith.constant 0 : index
    %11 = vector.load %arg14[%c0_4, %10, %c0_5] : memref<2x8x32xf32, #tpu.memory_space<vmem>>, vector<2x8x32xf32>
    %c0_6 = arith.constant 0 : index
    %c0_7 = arith.constant 0 : index
    %c0_8 = arith.constant 0 : index
    %12 = vector.load %arg12[%c0_6, %c0_7, %c0_8] : memref<2x8x32xf32, #tpu.memory_space<vmem>>, vector<2x8x32xf32>
    %cst = arith.constant dense<0.000000e+00> : vector<2x8x8xf32>
    %13 = tpu.matmul %12, %9, %cst {dimension_numbers = #tpu.dot_dimension_numbers<[2], [2], [1], [1], [0, 0, 0, 1, 1, 1], [0], [0]>} : vector<2x8x32xf32>, vector<2x8x32xf32>, vector<2x8x8xf32> -> vector<2x8x8xf32>
    %c0_9 = arith.constant 0 : index
    %c0_10 = arith.constant 0 : index
    %c0_11 = arith.constant 0 : index
    %14 = vector.load %arg15[%c0_9, %c0_10, %c0_11] : memref<2x8x1xf32, #tpu.memory_space<vmem>>, vector<2x8x1xf32>
    %cst_12 = arith.constant dense<0xFF800000> : vector<2x8xf32>
    %15 = vector.multi_reduction <maximumf>, %13, %cst_12 [2] : vector<2x8x8xf32> to vector<2x8xf32>
    %16 = vector.shape_cast %15 : vector<2x8xf32> to vector<2x8x1xf32>
    %17 = arith.maximumf %14, %16 : vector<2x8x1xf32>
    %18 = arith.subf %14, %17 : vector<2x8x1xf32>
    %19 = math.exp %18 : vector<2x8x1xf32>
    %20 = vector.broadcast %17 : vector<2x8x1xf32> to vector<2x8x8xf32>
    %21 = arith.subf %13, %20 : vector<2x8x8xf32>
    %22 = math.exp %21 : vector<2x8x8xf32>
    %c0_13 = arith.constant 0 : index
    %c0_14 = arith.constant 0 : index
    %c0_15 = arith.constant 0 : index
    %23 = vector.load %arg16[%c0_13, %c0_14, %c0_15] : memref<2x8x1xf32, #tpu.memory_space<vmem>>, vector<2x8x1xf32>
    %24 = arith.mulf %19, %23 : vector<2x8x1xf32>
    %cst_16 = arith.constant dense<0.000000e+00> : vector<2x8xf32>
    %25 = vector.multi_reduction <add>, %22, %cst_16 [2] : vector<2x8x8xf32> to vector<2x8xf32>
    %26 = vector.shape_cast %25 : vector<2x8xf32> to vector<2x8x1xf32>
    %27 = arith.addf %24, %26 : vector<2x8x1xf32>
    %c0_17 = arith.constant 0 : index
    %c0_18 = arith.constant 0 : index
    %c0_19 = arith.constant 0 : index
    %28 = vector.load %arg16[%c0_17, %c0_18, %c0_19] : memref<2x8x1xf32, #tpu.memory_space<vmem>>, vector<2x8x1xf32>
    tpu.vector_store %arg16[%c0_17, %c0_18, %c0_19], %27 {strides = array<i32>} : memref<2x8x1xf32, #tpu.memory_space<vmem>>, vector<2x8x1xf32>,
    %c0_20 = arith.constant 0 : index
    %c0_21 = arith.constant 0 : index
    %c0_22 = arith.constant 0 : index
    %29 = vector.load %arg17[%c0_20, %c0_21, %c0_22] : memref<2x8x32xf32, #tpu.memory_space<vmem>>, vector<2x8x32xf32>
    %30 = vector.broadcast %19 : vector<2x8x1xf32> to vector<2x8x32xf32>
    %31 = arith.mulf %30, %29 : vector<2x8x32xf32>
    %cst_23 = arith.constant dense<0.000000e+00> : vector<2x8x32xf32>
    %32 = tpu.matmul %22, %11, %cst_23 {dimension_numbers = #tpu.dot_dimension_numbers<[2], [1], [1], [2], [0, 0, 0, 1, 1, 2], [0], [0]>} : vector<2x8x8xf32>, vector<2x8x32xf32>, vector<2x8x32xf32> -> vector<2x8x32xf32>
    %33 = arith.addf %31, %32 : vector<2x8x32xf32>
    %c0_24 = arith.constant 0 : index
    %c0_25 = arith.constant 0 : index
    %c0_26 = arith.constant 0 : index
    %34 = vector.load %arg17[%c0_24, %c0_25, %c0_26] : memref<2x8x32xf32, #tpu.memory_space<vmem>>, vector<2x8x32xf32>
    tpu.vector_store %arg17[%c0_24, %c0_25, %c0_26], %33 {strides = array<i32>} : memref<2x8x32xf32, #tpu.memory_space<vmem>>, vector<2x8x32xf32>,
    %c0_27 = arith.constant 0 : index
    %c0_28 = arith.constant 0 : index
    %c0_29 = arith.constant 0 : index
    %35 = vector.load %arg15[%c0_27, %c0_28, %c0_29] : memref<2x8x1xf32, #tpu.memory_space<vmem>>, vector<2x8x1xf32>
    tpu.vector_store %arg15[%c0_27, %c0_28, %c0_29], %17 {strides = array<i32>} : memref<2x8x1xf32, #tpu.memory_space<vmem>>, vector<2x8x1xf32>,
    %c0_i32_30 = arith.constant 0 : i32
    %36 = arith.cmpi eq, %arg2, %c0_i32_30 : i32
    %37 = arith.extui %36 : i1 to i32
    %c0_i32_31 = arith.constant 0 : i32
    %38 = arith.cmpi ne, %37, %c0_i32_31 : i32
    scf.if %38 {
      %c0_32 = arith.constant 0 : index
      %c0_33 = arith.constant 0 : index
      %c0_34 = arith.constant 0 : index
      %39 = vector.load %arg16[%c0_32, %c0_33, %c0_34] : memref<2x8x1xf32, #tpu.memory_space<vmem>>, vector<2x8x1xf32>
      %40 = tpu.reciprocal %39 {approx = true} : vector<2x8x1xf32> -> vector<2x8x1xf32>
      %c0_35 = arith.constant 0 : index
      %c0_36 = arith.constant 0 : index
      %c0_37 = arith.constant 0 : index
      %41 = vector.load %arg17[%c0_35, %c0_36, %c0_37] : memref<2x8x32xf32, #tpu.memory_space<vmem>>, vector<2x8x32xf32>
      %42 = vector.broadcast %40 : vector<2x8x1xf32> to vector<2x8x32xf32>
      %43 = arith.mulf %41, %42 : vector<2x8x32xf32>
      %c0_38 = arith.constant 0 : index
      %c0_39 = arith.constant 0 : index
      %c0_40 = arith.constant 0 : index
      %44 = vector.load %arg11[%c0_38, %c0_39, %c0_40] : memref<2x8x32xf32, #tpu.memory_space<vmem>>, vector<2x8x32xf32>
      tpu.vector_store %arg11[%c0_38, %c0_39, %c0_40], %43 {strides = array<i32>} : memref<2x8x32xf32, #tpu.memory_space<vmem>>, vector<2x8x32xf32>,
    } else {
    }
    return
  }
  func.func @transform_0(%arg0: i32, %arg1: i32, %arg2: i32) -> (i32, i32, i32) {
    %c0_i32 = arith.constant 0 : i32
    %c0_i32_0 = arith.constant 0 : i32
    return %arg0, %arg1, %c0_i32 : i32, i32, i32
  }
  func.func @transform_1(%arg0: i32, %arg1: i32, %arg2: i32) -> (i32, i32, i32) {
    %c0_i32 = arith.constant 0 : i32
    %0 = arith.cmpi eq, %arg1, %c0_i32 : i32
    %c0_i32_0 = arith.constant 0 : i32
    %1 = arith.select %0, %arg2, %c0_i32_0 : i32
    %c0_i32_1 = arith.constant 0 : i32
    %c0_i32_2 = arith.constant 0 : i32
    return %arg0, %1, %c0_i32_1 : i32, i32, i32
  }
  func.func @transform_2(%arg0: i32, %arg1: i32, %arg2: i32) -> (i32, i32) {
    %c0_i32 = arith.constant 0 : i32
    %c0_i32_0 = arith.constant 0 : i32
    %c0_i32_1 = arith.constant 0 : i32
    return %c0_i32, %c0_i32_0 : i32, i32
  }
  func.func @transform_3(%arg0: i32, %arg1: i32, %arg2: i32) -> (i32, i32) {
    %c0_i32 = arith.constant 0 : i32
    %c0_i32_0 = arith.constant 0 : i32
    %c0_i32_1 = arith.constant 0 : i32
    return %c0_i32, %c0_i32_0 : i32, i32
  }
  func.func @transform_4(%arg0: i32, %arg1: i32, %arg2: i32) -> (i32, i32) {
    %c0_i32 = arith.constant 0 : i32
    %c0_i32_0 = arith.constant 0 : i32
    %c0_i32_1 = arith.constant 0 : i32
    return %c0_i32, %c0_i32_0 : i32, i32
  }
  func.func @transform_5(%arg0: i32, %arg1: i32, %arg2: i32) -> (i32, i32) {
    %c0_i32 = arith.constant 0 : i32
    %c0_i32_0 = arith.constant 0 : i32
    %c0_i32_1 = arith.constant 0 : i32
    return %c0_i32, %c0_i32_0 : i32, i32
  }
  func.func @transform_6(%arg0: i32, %arg1: i32, %arg2: i32) -> (i32, i32) {
    %c0_i32 = arith.constant 0 : i32
    %c0_i32_0 = arith.constant 0 : i32
    %c0_i32_1 = arith.constant 0 : i32
    return %c0_i32, %c0_i32_0 : i32, i32
  }
  func.func @transform_7(%arg0: i32, %arg1: i32, %arg2: i32) -> (i32, i32) {
    %c0_i32 = arith.constant 0 : i32
    %c0_i32_0 = arith.constant 0 : i32
    %c0_i32_1 = arith.constant 0 : i32
    return %c0_i32, %c0_i32_0 : i32, i32
  }
  func.func @transform_8(%arg0: i32, %arg1: i32, %arg2: i32) -> (i32, i32, i32) {
    %c0_i32 = arith.constant 0 : i32
    %c0_i32_0 = arith.constant 0 : i32
    return %arg0, %arg1, %c0_i32 : i32, i32, i32
  }
}

</mosaic_0001>

<llo_original>
// kernel: tpu_custom_call.1
$region0: #{tpu_custom_call.1}
  #allocation0 [shape = 'u32[]', space=smem, size = 0x4, offset = 0x4, fixed_abs, tag = 'smem constant byte address 0x4 - core index']
  #allocation1 [shape = 'u32[144,128]{1,0:T(1,128)}', space=vmem, size = 0x12000, scoped, tag = 'internal scratch']
  #allocation2 [shape = 'f32[2,8,32]{2,1,0:T(8,128)}', space=vmem, size = 0x2000, scoped, tag = 'scratch operand']
  #allocation3 [shape = 'f32[2,8,32]{2,1,0:T(8,128)}', space=vmem, size = 0x2000, scoped, tag = 'scratch operand']
  #allocation4 [shape = 'f32[2,8,32]{2,1,0:T(8,128)}', space=vmem, size = 0x2000, scoped, tag = 'scratch operand']
  #allocation5 [shape = 'f32[2,8,1]{2,1,0:T(8,128)}', space=vmem, size = 0x2000, scoped, tag = 'scratch operand']
  #allocation6 [shape = 'f32[2,8,1]{2,1,0:T(8,128)}', space=vmem, size = 0x2000, scoped, tag = 'scratch operand']
  #allocation7 [shape = 'f32[2,8,32]{2,1,0:T(8,128)}', space=vmem, size = 0x2000, scoped, tag = 'scratch operand']
  %s0 = inlined_call_operand.hbm [shape: f32[2,8,32], index: 0, kind: input, shape index: {}]
  %s1 = inlined_call_operand.hbm [shape: f32[2,8,32], index: 1, kind: input, shape index: {}]
  %s2 = inlined_call_operand.hbm [shape: f32[32,32], index: 2, kind: input, shape index: {}]
  %s3 = inlined_call_operand.vmem [shape: f32[1,32], index: 3, kind: input, shape index: {}]
  %s4 = inlined_call_operand.hbm [shape: f32[32,32], index: 4, kind: input, shape index: {}]
  %s5 = inlined_call_operand.vmem [shape: f32[1,32], index: 5, kind: input, shape index: {}]
  %s6 = inlined_call_operand.hbm [shape: f32[32,32], index: 6, kind: input, shape index: {}]
  %s7 = inlined_call_operand.vmem [shape: f32[1,32], index: 7, kind: input, shape index: {}]
  %s8 = inlined_call_operand.hbm [shape: f32[2,8,32], index: 8, kind: output, shape index: {}]
  %s9 = sld [smem:[#allocation0]]
  $region74: #{tpu_custom_call.1} parent=0
    _
  %s11 = ssub.s32 1, %s9
  %s12 = scalar_select 0, %s11, %s9
  $region1: #{tpu_custom_call.1} parent=0
    #allocation8 [shape = 'u8[8192]{0}', space=vmem, size = 0x2000, scoped, tag = 'input window, operand 0, single buffered']
    #allocation9 [shape = 's32[1]{0}', space=sflag, size = 0x4, scoped, tag = 'scoped memory for tpu_custom_call.1']
    #allocation10 [shape = 's32[1]{0}', space=sflag, size = 0x4, scoped, tag = 'scoped memory for tpu_custom_call.1']
    #allocation11 [shape = 'u8[8192]{0}', space=vmem, size = 0x2000, scoped, tag = 'input window, operand 1, single buffered']
    #allocation12 [shape = 's32[1]{0}', space=sflag, size = 0x4, scoped, tag = 'scoped memory for tpu_custom_call.1']
    #allocation13 [shape = 'u8[16384]{0}', space=vmem, size = 0x4000, scoped, tag = 'input window, operand 2, single buffered']
    #allocation14 [shape = 'u8[16384]{0}', space=vmem, size = 0x4000, scoped, tag = 'input window, operand 4, single buffered']
    #allocation15 [shape = 's32[1]{0}', space=sflag, size = 0x4, scoped, tag = 'scoped memory for tpu_custom_call.1']
    #allocation16 [shape = 'u8[16384]{0}', space=vmem, size = 0x4000, scoped, tag = 'input window, operand 6, single buffered']
    #allocation17 [shape = 'u8[8192]{0}', space=vmem, size = 0x2000, scoped, tag = 'output window, operand 0, single buffered']
    %13 = vsyncpa [#allocation9], 0
    %14 = vsyncpa [#allocation12], 0
    %15 = vsyncpa [#allocation15], 0
    %16 = vsyncpa [#allocation10], 0
    // Predicated region
    $region2: #{tpu_custom_call.1} parent=1 // pred_check
      _
    $region3: #{tpu_custom_call.1} parent=1 // pred_check_branch
      %18 = sbr.rel (0) target = $region5
    $region4: #{tpu_custom_call.1} parent=1 // pred_region
      %s20 = ssub.s32 256, 256
      %21 = vsyncadd [#allocation9], %s20
      %s22 = sshll.u32 [#allocation8], 4
      %s23 = int_to_ptr.vmem [resolvable:$true] %s22
      %28 = dma.hbm_to_vmem [thread:$0]  %s0, 256, %s23, [#allocation9], 128, 128, 8
    $region5: #{tpu_custom_call.1} parent=1 // pred_fallthru
      _
    // Predicated region
    $region6: #{tpu_custom_call.1} parent=1 // pred_check
      _
    $region7: #{tpu_custom_call.1} parent=1 // pred_check_branch
      %30 = sbr.rel (0) target = $region9
    $region8: #{tpu_custom_call.1} parent=1 // pred_region
      %p31 = scmp.eq.s32.totalorder 0, 0
      %s32 = scalar_select %p31, 0, 0
      %s34 = ssub.s32 256, 256
      %35 = vsyncadd [#allocation12], %s34
      %s36 = smul.addr %s32, 128
      %s37 = scalar_lea.hbm %s1, %s36
      %s38 = sshll.u32 [#allocation11], 4
      %s39 = int_to_ptr.vmem [resolvable:$true] %s38
      %44 = dma.hbm_to_vmem [thread:$0]  %s37, 256, %s39, [#allocation12], 128, 128, 8
    $region9: #{tpu_custom_call.1} parent=1 // pred_fallthru
      _
    // Predicated region
    $region10: #{tpu_custom_call.1} parent=1 // pred_check
      _
    $region11: #{tpu_custom_call.1} parent=1 // pred_check_branch
      %46 = sbr.rel (0) target = $region13
    $region12: #{tpu_custom_call.1} parent=1 // pred_region
      %s48 = ssub.s32 512, 512
      %49 = vsyncadd [#allocation12], %s48
      %s50 = sshll.u32 [#allocation13], 4
      %s51 = int_to_ptr.vmem [resolvable:$true] %s50
      %56 = dma.hbm_to_vmem [thread:$0]  %s2, 512, %s51, [#allocation12], 128, 128, 8
    $region13: #{tpu_custom_call.1} parent=1 // pred_fallthru
      _
    // Predicated region
    $region14: #{tpu_custom_call.1} parent=1 // pred_check
      _
    $region15: #{tpu_custom_call.1} parent=1 // pred_check_branch
      %58 = sbr.rel (0) target = $region17
    $region16: #{tpu_custom_call.1} parent=1 // pred_region
      _
    $region17: #{tpu_custom_call.1} parent=1 // pred_fallthru
      _
    // Predicated region
    $region18: #{tpu_custom_call.1} parent=1 // pred_check
      _
    $region19: #{tpu_custom_call.1} parent=1 // pred_check_branch
      %60 = sbr.rel (0) target = $region21
    $region20: #{tpu_custom_call.1} parent=1 // pred_region
      %s62 = ssub.s32 512, 512
      %63 = vsyncadd [#allocation15], %s62
      %s64 = sshll.u32 [#allocation14], 4
      %s65 = int_to_ptr.vmem [resolvable:$true] %s64
      %70 = dma.hbm_to_vmem [thread:$0]  %s4, 512, %s65, [#allocation15], 128, 128, 8
    $region21: #{tpu_custom_call.1} parent=1 // pred_fallthru
      _
    // Predicated region
    $region22: #{tpu_custom_call.1} parent=1 // pred_check
      _
    $region23: #{tpu_custom_call.1} parent=1 // pred_check_branch
      %72 = sbr.rel (0) target = $region25
    $region24: #{tpu_custom_call.1} parent=1 // pred_region
      _
    $region25: #{tpu_custom_call.1} parent=1 // pred_fallthru
      _
    // Predicated region
    $region26: #{tpu_custom_call.1} parent=1 // pred_check
      _
    $region27: #{tpu_custom_call.1} parent=1 // pred_check_branch
      %74 = sbr.rel (0) target = $region29
    $region28: #{tpu_custom_call.1} parent=1 // pred_region
      %s76 = ssub.s32 512, 512
      %77 = vsyncadd [#allocation15], %s76
      %s78 = sshll.u32 [#allocation16], 4
      %s79 = int_to_ptr.vmem [resolvable:$true] %s78
      %84 = dma.hbm_to_vmem [thread:$0]  %s6, 512, %s79, [#allocation15], 128, 128, 8
    $region29: #{tpu_custom_call.1} parent=1 // pred_fallthru
      _
    // Predicated region
    $region30: #{tpu_custom_call.1} parent=1 // pred_check
      _
    $region31: #{tpu_custom_call.1} parent=1 // pred_check_branch
      %86 = sbr.rel (0) target = $region33
    $region32: #{tpu_custom_call.1} parent=1 // pred_region
      _
    $region33: #{tpu_custom_call.1} parent=1 // pred_fallthru
      _
    // Predicated region
    $region34: #{tpu_custom_call.1} parent=1 // pred_check
      _
    $region35: #{tpu_custom_call.1} parent=1 // pred_check_branch
      %88 = sbr.rel (0) target = $region37
    $region36: #{tpu_custom_call.1} parent=1 // pred_region
      %89 = dma.done [#allocation9], 256
    $region37: #{tpu_custom_call.1} parent=1 // pred_fallthru
      _
    // Predicated region
    $region38: #{tpu_custom_call.1} parent=1 // pred_check
      _
    $region39: #{tpu_custom_call.1} parent=1 // pred_check_branch
      %91 = sbr.rel (0) target = $region41
    $region40: #{tpu_custom_call.1} parent=1 // pred_region
      %92 = dma.done [#allocation12], 256
    $region41: #{tpu_custom_call.1} parent=1 // pred_fallthru
      _
    // Predicated region
    $region42: #{tpu_custom_call.1} parent=1 // pred_check
      _
    $region43: #{tpu_custom_call.1} parent=1 // pred_check_branch
      %94 = sbr.rel (0) target = $region45
    $region44: #{tpu_custom_call.1} parent=1 // pred_region
      %95 = dma.done [#allocation12], 512
    $region45: #{tpu_custom_call.1} parent=1 // pred_fallthru
      _
    // Predicated region
    $region46: #{tpu_custom_call.1} parent=1 // pred_check
      _
    $region47: #{tpu_custom_call.1} parent=1 // pred_check_branch
      %97 = sbr.rel (0) target = $region49
    $region48: #{tpu_custom_call.1} parent=1 // pred_region
      %98 = dma.done [#allocation15], 512
    $region49: #{tpu_custom_call.1} parent=1 // pred_fallthru
      _
    // Predicated region
    $region50: #{tpu_custom_call.1} parent=1 // pred_check
      _
    $region51: #{tpu_custom_call.1} parent=1 // pred_check_branch
      %100 = sbr.rel (0) target = $region53
    $region52: #{tpu_custom_call.1} parent=1 // pred_region
      %101 = dma.done [#allocation15], 512
    $region53: #{tpu_custom_call.1} parent=1 // pred_fallthru
      _
    %p102 = scmp.eq.s32.totalorder 0, 0
    %s103 = scalar_select %p102, 0, 0
    %s104 = smul.u32 0, 8
    %p105 = scmp.eq.s32.totalorder 0, 0
    // Predicated region
    $region54: #{tpu_custom_call.1} parent=1 // pred_check
      %p106 = pneg %p105
    $region55: #{tpu_custom_call.1} parent=1 // pred_check_branch
      %108 = sbr.rel (%p106) target = $region57
    $region56: #{tpu_custom_call.1} parent=1 // pred_region
      %v109 = vld [vmem:[#allocation11] sm:$0xff]
      %v110 = vld [vmem:[#allocation11 + $0x8] sm:$0xff]
      %v111 = vld [vmem:[#allocation14] sm:$0xff]
      %v112 = vld [vmem:[#allocation14 + $0x8] sm:$0xff]
      %v113 = vld [vmem:[#allocation14 + $0x10] sm:$0xff]
      %v114 = vld [vmem:[#allocation14 + $0x18] sm:$0xff]
      %v115 = vld [vmem:[%s5] sm:$0x1]
      %v117 = vlaneseq
      %v118 = vshrl.u32 %v117, 7
      %v119 = vsub.s32 0, %v118
      %v120 = vrot.slane %v115, %v119
      %vm122 = vcmask 261120
      %v124 = vsel %vm122, %v109, 0
      %v127 = vsel %vm122, %v110, 0
      %129 = vmatprep.subr.mxu0 0.0
      %130 = vmatpush1.msra.mxu0 0.0
      %131 = vmatprep.subr.mxu0 0.0
      %132 = vmatpush1.msra.mxu0 0.0
      %133 = vmatprep.subr.mxu0 0.0
      %134 = vmatpush1.msra.mxu0 0.0
      %135 = vmatprep.subr.mxu0 0.0
      %136 = vmatpush1.msra.mxu0 0.0
      %137 = vmatprep.subr.mxu0 0.0
      %138 = vmatpush1.msra.mxu0 0.0
      %139 = vmatprep.subr.mxu0 0.0
      %140 = vmatpush1.msra.mxu0 0.0
      %141 = vmatprep.subr.mxu0 0.0
      %142 = vmatpush1.msra.mxu0 0.0
      %143 = vmatprep.subr.mxu0 0.0
      %144 = vmatpush1.msra.mxu0 0.0
      %145 = vmatprep.subr.mxu0 0.0
      %146 = vmatpush1.msra.mxu0 0.0
      %147 = vmatprep.subr.mxu0 0.0
      %148 = vmatpush1.msra.mxu0 0.0
      %149 = vmatprep.subr.mxu0 0.0
      %150 = vmatpush1.msra.mxu0 0.0
      %151 = vmatprep.subr.mxu0 0.0
      %152 = vmatpush1.msra.mxu0 0.0
      %153 = vmatprep.subr.mxu0 0.0
      %154 = vmatpush1.msra.mxu0 %v114
      %155 = vmatprep.subr.mxu0 0.0
      %156 = vmatpush1.msra.mxu0 %v113
      %157 = vmatprep.subr.mxu0 0.0
      %158 = vmatpush1.msra.mxu0 %v112
      %159 = vmatprep.subr.mxu0 0.0
      %160 = vmatpush1.msra.mxu0 %v111
      %161 = vmatprep.subr.mxu0 0.0
      %162 = vmatpush2.msra.mxu0 0.0
      %163 = vmatprep.subr.mxu0 0.0
      %164 = vmatpush2.msra.mxu0 0.0
      %165 = vmatprep.subr.mxu0 0.0
      %166 = vmatpush2.msra.mxu0 0.0
      %167 = vmatprep.subr.mxu0 0.0
      %168 = vmatpush2.msra.mxu0 0.0
      %169 = vmatprep.subr.mxu0 0.0
      %170 = vmatpush2.msra.mxu0 0.0
      %171 = vmatprep.subr.mxu0 0.0
      %172 = vmatpush2.msra.mxu0 0.0
      %173 = vmatprep.subr.mxu0 0.0
      %174 = vmatpush2.msra.mxu0 0.0
      %175 = vmatprep.subr.mxu0 0.0
      %176 = vmatpush2.msra.mxu0 0.0
      %177 = vmatprep.subr.mxu0 0.0
      %178 = vmatpush2.msra.mxu0 0.0
      %179 = vmatprep.subr.mxu0 0.0
      %180 = vmatpush2.msra.mxu0 0.0
      %181 = vmatprep.subr.mxu0 0.0
      %182 = vmatpush2.msra.mxu0 0.0
      %183 = vmatprep.subr.mxu0 0.0
      %184 = vmatpush2.msra.mxu0 0.0
      %185 = vmatprep.subr.mxu0 0.0
      %186 = vmatpush2.msra.mxu0 0.0
      %187 = vmatprep.subr.mxu0 0.0
      %188 = vmatpush2.msra.mxu0 0.0
      %189 = vmatprep.subr.mxu0 0.0
      %190 = vmatpush2.msra.mxu0 0.0
      %191 = vmatprep.subr.mxu0 0.0
      %192 = vmatpush2.msra.mxu0 0.0
      %193 = vmatprep.mubr.f32.mxu0 0.0
      %194 = vmatmul.mubr.f32.gmra.mxu0 %v124
      %v195 = vpop.f32.mrf.mxu0
      %v196 = vadd.f32 %v120, %v195
      %v197 = vpop.f32.mrf.mxu0
      %198 = vmatprep.mubr.f32.mxu0 0.0
      %199 = vmatmul.mubr.f32.gmra.mxu0 %v127
      %v200 = vpop.f32.mrf.mxu0
      %v201 = vadd.f32 %v120, %v200
      %v202 = vpop.f32.mrf.mxu0
      %203 = vdwg.mxu0
      %v204 = vld [vmem:[#allocation16] sm:$0xff]
      %v205 = vld [vmem:[#allocation16 + $0x8] sm:$0xff]
      %v206 = vld [vmem:[#allocation16 + $0x10] sm:$0xff]
      %v207 = vld [vmem:[#allocation16 + $0x18] sm:$0xff]
      %v208 = vld [vmem:[%s7] sm:$0x1]
      %v210 = vlaneseq
      %v211 = vshrl.u32 %v210, 7
      %v212 = vsub.s32 0, %v211
      %v213 = vrot.slane %v208, %v212
      %215 = vmatprep.subr.mxu0 0.0
      %216 = vmatpush1.msra.mxu0 0.0
      %217 = vmatprep.subr.mxu0 0.0
      %218 = vmatpush1.msra.mxu0 0.0
      %219 = vmatprep.subr.mxu0 0.0
      %220 = vmatpush1.msra.mxu0 0.0
      %221 = vmatprep.subr.mxu0 0.0
      %222 = vmatpush1.msra.mxu0 0.0
      %223 = vmatprep.subr.mxu0 0.0
      %224 = vmatpush1.msra.mxu0 0.0
      %225 = vmatprep.subr.mxu0 0.0
      %226 = vmatpush1.msra.mxu0 0.0
      %227 = vmatprep.subr.mxu0 0.0
      %228 = vmatpush1.msra.mxu0 0.0
      %229 = vmatprep.subr.mxu0 0.0
      %230 = vmatpush1.msra.mxu0 0.0
      %231 = vmatprep.subr.mxu0 0.0
      %232 = vmatpush1.msra.mxu0 0.0
      %233 = vmatprep.subr.mxu0 0.0
      %234 = vmatpush1.msra.mxu0 0.0
      %235 = vmatprep.subr.mxu0 0.0
      %236 = vmatpush1.msra.mxu0 0.0
      %237 = vmatprep.subr.mxu0 0.0
      %238 = vmatpush1.msra.mxu0 0.0
      %239 = vmatprep.subr.mxu0 0.0
      %240 = vmatpush1.msra.mxu0 %v207
      %241 = vmatprep.subr.mxu0 0.0
      %242 = vmatpush1.msra.mxu0 %v206
      %243 = vmatprep.subr.mxu0 0.0
      %244 = vmatpush1.msra.mxu0 %v205
      %245 = vmatprep.subr.mxu0 0.0
      %246 = vmatpush1.msra.mxu0 %v204
      %247 = vmatprep.subr.mxu0 0.0
      %248 = vmatpush2.msra.mxu0 0.0
      %249 = vmatprep.subr.mxu0 0.0
      %250 = vmatpush2.msra.mxu0 0.0
      %251 = vmatprep.subr.mxu0 0.0
      %252 = vmatpush2.msra.mxu0 0.0
      %253 = vmatprep.subr.mxu0 0.0
      %254 = vmatpush2.msra.mxu0 0.0
      %255 = vmatprep.subr.mxu0 0.0
      %256 = vmatpush2.msra.mxu0 0.0
      %257 = vmatprep.subr.mxu0 0.0
      %258 = vmatpush2.msra.mxu0 0.0
      %259 = vmatprep.subr.mxu0 0.0
      %260 = vmatpush2.msra.mxu0 0.0
      %261 = vmatprep.subr.mxu0 0.0
      %262 = vmatpush2.msra.mxu0 0.0
      %263 = vmatprep.subr.mxu0 0.0
      %264 = vmatpush2.msra.mxu0 0.0
      %265 = vmatprep.subr.mxu0 0.0
      %266 = vmatpush2.msra.mxu0 0.0
      %267 = vmatprep.subr.mxu0 0.0
      %268 = vmatpush2.msra.mxu0 0.0
      %269 = vmatprep.subr.mxu0 0.0
      %270 = vmatpush2.msra.mxu0 0.0
      %271 = vmatprep.subr.mxu0 0.0
      %272 = vmatpush2.msra.mxu0 0.0
      %273 = vmatprep.subr.mxu0 0.0
      %274 = vmatpush2.msra.mxu0 0.0
      %275 = vmatprep.subr.mxu0 0.0
      %276 = vmatpush2.msra.mxu0 0.0
      %277 = vmatprep.subr.mxu0 0.0
      %278 = vmatpush2.msra.mxu0 0.0
      %279 = vmatprep.mubr.f32.mxu0 0.0
      %280 = vmatmul.mubr.f32.gmra.mxu0 %v124
      %v281 = vpop.f32.mrf.mxu0
      %v282 = vadd.f32 %v213, %v281
      %v283 = vpop.f32.mrf.mxu0
      %284 = vmatprep.mubr.f32.mxu0 0.0
      %285 = vmatmul.mubr.f32.gmra.mxu0 %v127
      %v286 = vpop.f32.mrf.mxu0
      %v287 = vadd.f32 %v213, %v286
      %v288 = vpop.f32.mrf.mxu0
      %289 = vdwg.mxu0
      %s290 = scalar_lea.vmem [#allocation3], %s104
      %291 = vst.msk [vmem:[%s290] sm:$0xff] %vm122, %v196
      %292 = vst.msk [vmem:[%s290 + $0x8] sm:$0xff] %vm122, %v201
      %s293 = scalar_lea.vmem [#allocation4], %s104
      %294 = vst.msk [vmem:[%s293] sm:$0xff] %vm122, %v282
      %295 = vst.msk [vmem:[%s293 + $0x8] sm:$0xff] %vm122, %v287
    $region57: #{tpu_custom_call.1} parent=1 // pred_fallthru
      _
    %p296 = scmp.eq.s32.totalorder 0, 0
    // Predicated region
    $region58: #{tpu_custom_call.1} parent=1 // pred_check
      %p297 = pneg %p296
    $region59: #{tpu_custom_call.1} parent=1 // pred_check_branch
      %299 = sbr.rel (%p297) target = $region61
    $region60: #{tpu_custom_call.1} parent=1 // pred_region
      %v300 = vld [vmem:[#allocation8] sm:$0xff]
      %v301 = vld [vmem:[#allocation8 + $0x8] sm:$0xff]
      %v302 = vld [vmem:[#allocation13] sm:$0xff]
      %v303 = vld [vmem:[#allocation13 + $0x8] sm:$0xff]
      %v304 = vld [vmem:[#allocation13 + $0x10] sm:$0xff]
      %v305 = vld [vmem:[#allocation13 + $0x18] sm:$0xff]
      %v306 = vld [vmem:[%s3] sm:$0x1]
      %v308 = vlaneseq
      %v309 = vshrl.u32 %v308, 7
      %v310 = vsub.s32 0, %v309
      %v311 = vrot.slane %v306, %v310
      %vm313 = vcmask 261120
      %v315 = vsel %vm313, %v300, 0
      %v318 = vsel %vm313, %v301, 0
      %320 = vmatprep.subr.mxu0 0.0
      %321 = vmatpush1.msra.mxu0 0.0
      %322 = vmatprep.subr.mxu0 0.0
      %323 = vmatpush1.msra.mxu0 0.0
      %324 = vmatprep.subr.mxu0 0.0
      %325 = vmatpush1.msra.mxu0 0.0
      %326 = vmatprep.subr.mxu0 0.0
      %327 = vmatpush1.msra.mxu0 0.0
      %328 = vmatprep.subr.mxu0 0.0
      %329 = vmatpush1.msra.mxu0 0.0
      %330 = vmatprep.subr.mxu0 0.0
      %331 = vmatpush1.msra.mxu0 0.0
      %332 = vmatprep.subr.mxu0 0.0
      %333 = vmatpush1.msra.mxu0 0.0
      %334 = vmatprep.subr.mxu0 0.0
      %335 = vmatpush1.msra.mxu0 0.0
      %336 = vmatprep.subr.mxu0 0.0
      %337 = vmatpush1.msra.mxu0 0.0
      %338 = vmatprep.subr.mxu0 0.0
      %339 = vmatpush1.msra.mxu0 0.0
      %340 = vmatprep.subr.mxu0 0.0
      %341 = vmatpush1.msra.mxu0 0.0
      %342 = vmatprep.subr.mxu0 0.0
      %343 = vmatpush1.msra.mxu0 0.0
      %344 = vmatprep.subr.mxu0 0.0
      %345 = vmatpush1.msra.mxu0 %v305
      %346 = vmatprep.subr.mxu0 0.0
      %347 = vmatpush1.msra.mxu0 %v304
      %348 = vmatprep.subr.mxu0 0.0
      %349 = vmatpush1.msra.mxu0 %v303
      %350 = vmatprep.subr.mxu0 0.0
      %351 = vmatpush1.msra.mxu0 %v302
      %352 = vmatprep.subr.mxu0 0.0
      %353 = vmatpush2.msra.mxu0 0.0
      %354 = vmatprep.subr.mxu0 0.0
      %355 = vmatpush2.msra.mxu0 0.0
      %356 = vmatprep.subr.mxu0 0.0
      %357 = vmatpush2.msra.mxu0 0.0
      %358 = vmatprep.subr.mxu0 0.0
      %359 = vmatpush2.msra.mxu0 0.0
      %360 = vmatprep.subr.mxu0 0.0
      %361 = vmatpush2.msra.mxu0 0.0
      %362 = vmatprep.subr.mxu0 0.0
      %363 = vmatpush2.msra.mxu0 0.0
      %364 = vmatprep.subr.mxu0 0.0
      %365 = vmatpush2.msra.mxu0 0.0
      %366 = vmatprep.subr.mxu0 0.0
      %367 = vmatpush2.msra.mxu0 0.0
      %368 = vmatprep.subr.mxu0 0.0
      %369 = vmatpush2.msra.mxu0 0.0
      %370 = vmatprep.subr.mxu0 0.0
      %371 = vmatpush2.msra.mxu0 0.0
      %372 = vmatprep.subr.mxu0 0.0
      %373 = vmatpush2.msra.mxu0 0.0
      %374 = vmatprep.subr.mxu0 0.0
      %375 = vmatpush2.msra.mxu0 0.0
      %376 = vmatprep.subr.mxu0 0.0
      %377 = vmatpush2.msra.mxu0 0.0
      %378 = vmatprep.subr.mxu0 0.0
      %379 = vmatpush2.msra.mxu0 0.0
      %380 = vmatprep.subr.mxu0 0.0
      %381 = vmatpush2.msra.mxu0 0.0
      %382 = vmatprep.subr.mxu0 0.0
      %383 = vmatpush2.msra.mxu0 0.0
      %384 = vmatprep.mubr.f32.mxu0 0.0
      %385 = vmatmul.mubr.f32.gmra.mxu0 %v315
      %v386 = vpop.f32.mrf.mxu0
      %v387 = vadd.f32 %v311, %v386
      %v388 = vpop.f32.mrf.mxu0
      %389 = vmatprep.mubr.f32.mxu0 0.0
      %390 = vmatmul.mubr.f32.gmra.mxu0 %v318
      %v391 = vpop.f32.mrf.mxu0
      %v392 = vadd.f32 %v311, %v391
      %v393 = vpop.f32.mrf.mxu0
      %394 = vdwg.mxu0
      %395 = vst.msk [vmem:[#allocation2] sm:$0xff] %vm313, %v387
      %396 = vst.msk [vmem:[#allocation2 + $0x8] sm:$0xff] %vm313, %v392
      %vm397 = vcmask 7168
      %398 = vst.msk [vmem:[#allocation5] sm:$0xff] %vm397, -inf
      %399 = vst.msk [vmem:[#allocation5 + $0x8] sm:$0xff] %vm397, -inf
      %400 = vst.msk [vmem:[#allocation6] sm:$0xff] %vm397, 0.0
      %401 = vst.msk [vmem:[#allocation6 + $0x8] sm:$0xff] %vm397, 0.0
      %402 = vst.msk [vmem:[#allocation7] sm:$0xff] %vm313, 0.0
      %403 = vst.msk [vmem:[#allocation7 + $0x8] sm:$0xff] %vm313, 0.0
    $region61: #{tpu_custom_call.1} parent=1 // pred_fallthru
      _
    %s404 = scalar_lea.vmem [#allocation3], %s104
    %v405 = vld [vmem:[%s404] sm:$0xff]
    %v406 = vld [vmem:[%s404 + $0x8] sm:$0xff]
    %s407 = scalar_lea.vmem [#allocation4], %s104
    %v408 = vld [vmem:[%s407] sm:$0xff]
    %v409 = vld [vmem:[%s407 + $0x8] sm:$0xff]
    %v410 = vld [vmem:[#allocation2] sm:$0xff]
    %v411 = vld [vmem:[#allocation2 + $0x8] sm:$0xff]
    %vm412 = vcmask 261120
    %v414 = vsel %vm412, %v410, 0
    %v417 = vsel %vm412, %v405, 0
    %419 = vmatprep.subr.mxu0 0.0
    %420 = vmatpush1.xpose.msra.mxu0 0.0
    %421 = vmatprep.subr.mxu0 0.0
    %422 = vmatpush1.xpose.msra.mxu0 0.0
    %423 = vmatprep.subr.mxu0 0.0
    %424 = vmatpush1.xpose.msra.mxu0 0.0
    %425 = vmatprep.subr.mxu0 0.0
    %426 = vmatpush1.xpose.msra.mxu0 0.0
    %427 = vmatprep.subr.mxu0 0.0
    %428 = vmatpush1.xpose.msra.mxu0 0.0
    %429 = vmatprep.subr.mxu0 0.0
    %430 = vmatpush1.xpose.msra.mxu0 0.0
    %431 = vmatprep.subr.mxu0 0.0
    %432 = vmatpush1.xpose.msra.mxu0 0.0
    %433 = vmatprep.subr.mxu0 0.0
    %434 = vmatpush1.xpose.msra.mxu0 0.0
    %435 = vmatprep.subr.mxu0 0.0
    %436 = vmatpush1.xpose.msra.mxu0 0.0
    %437 = vmatprep.subr.mxu0 0.0
    %438 = vmatpush1.xpose.msra.mxu0 0.0
    %439 = vmatprep.subr.mxu0 0.0
    %440 = vmatpush1.xpose.msra.mxu0 0.0
    %441 = vmatprep.subr.mxu0 0.0
    %442 = vmatpush1.xpose.msra.mxu0 0.0
    %443 = vmatprep.subr.mxu0 0.0
    %444 = vmatpush1.xpose.msra.mxu0 0.0
    %445 = vmatprep.subr.mxu0 0.0
    %446 = vmatpush1.xpose.msra.mxu0 0.0
    %447 = vmatprep.subr.mxu0 0.0
    %448 = vmatpush1.xpose.msra.mxu0 0.0
    %449 = vmatprep.subr.mxu0 0.0
    %450 = vmatpush1.xpose.msra.mxu0 %v417
    %451 = vmatprep.subr.mxu0 0.0
    %452 = vmatpush2.xpose.msra.mxu0 0.0
    %453 = vmatprep.subr.mxu0 0.0
    %454 = vmatpush2.xpose.msra.mxu0 0.0
    %455 = vmatprep.subr.mxu0 0.0
    %456 = vmatpush2.xpose.msra.mxu0 0.0
    %457 = vmatprep.subr.mxu0 0.0
    %458 = vmatpush2.xpose.msra.mxu0 0.0
    %459 = vmatprep.subr.mxu0 0.0
    %460 = vmatpush2.xpose.msra.mxu0 0.0
    %461 = vmatprep.subr.mxu0 0.0
    %462 = vmatpush2.xpose.msra.mxu0 0.0
    %463 = vmatprep.subr.mxu0 0.0
    %464 = vmatpush2.xpose.msra.mxu0 0.0
    %465 = vmatprep.subr.mxu0 0.0
    %466 = vmatpush2.xpose.msra.mxu0 0.0
    %467 = vmatprep.subr.mxu0 0.0
    %468 = vmatpush2.xpose.msra.mxu0 0.0
    %469 = vmatprep.subr.mxu0 0.0
    %470 = vmatpush2.xpose.msra.mxu0 0.0
    %471 = vmatprep.subr.mxu0 0.0
    %472 = vmatpush2.xpose.msra.mxu0 0.0
    %473 = vmatprep.subr.mxu0 0.0
    %474 = vmatpush2.xpose.msra.mxu0 0.0
    %475 = vmatprep.subr.mxu0 0.0
    %476 = vmatpush2.xpose.msra.mxu0 0.0
    %477 = vmatprep.subr.mxu0 0.0
    %478 = vmatpush2.xpose.msra.mxu0 0.0
    %479 = vmatprep.subr.mxu0 0.0
    %480 = vmatpush2.xpose.msra.mxu0 0.0
    %481 = vmatprep.subr.mxu0 0.0
    %482 = vmatpush2.xpose.msra.mxu0 0.0
    %483 = vmatprep.mubr.f32.mxu0 0.0
    %484 = vmatmul.mubr.f32.gmra.mxu0 %v414
    %v485 = vpop.f32.mrf.mxu0
    %v486 = vadd.f32 0.0, %v485
    %v487 = vpop.f32.mrf.mxu0
    %488 = vdwg.mxu0
    %v490 = vsel %vm412, %v411, 0
    %v493 = vsel %vm412, %v406, 0
    %495 = vmatprep.subr.mxu0 0.0
    %496 = vmatpush1.xpose.msra.mxu0 0.0
    %497 = vmatprep.subr.mxu0 0.0
    %498 = vmatpush1.xpose.msra.mxu0 0.0
    %499 = vmatprep.subr.mxu0 0.0
    %500 = vmatpush1.xpose.msra.mxu0 0.0
    %501 = vmatprep.subr.mxu0 0.0
    %502 = vmatpush1.xpose.msra.mxu0 0.0
    %503 = vmatprep.subr.mxu0 0.0
    %504 = vmatpush1.xpose.msra.mxu0 0.0
    %505 = vmatprep.subr.mxu0 0.0
    %506 = vmatpush1.xpose.msra.mxu0 0.0
    %507 = vmatprep.subr.mxu0 0.0
    %508 = vmatpush1.xpose.msra.mxu0 0.0
    %509 = vmatprep.subr.mxu0 0.0
    %510 = vmatpush1.xpose.msra.mxu0 0.0
    %511 = vmatprep.subr.mxu0 0.0
    %512 = vmatpush1.xpose.msra.mxu0 0.0
    %513 = vmatprep.subr.mxu0 0.0
    %514 = vmatpush1.xpose.msra.mxu0 0.0
    %515 = vmatprep.subr.mxu0 0.0
    %516 = vmatpush1.xpose.msra.mxu0 0.0
    %517 = vmatprep.subr.mxu0 0.0
    %518 = vmatpush1.xpose.msra.mxu0 0.0
    %519 = vmatprep.subr.mxu0 0.0
    %520 = vmatpush1.xpose.msra.mxu0 0.0
    %521 = vmatprep.subr.mxu0 0.0
    %522 = vmatpush1.xpose.msra.mxu0 0.0
    %523 = vmatprep.subr.mxu0 0.0
    %524 = vmatpush1.xpose.msra.mxu0 0.0
    %525 = vmatprep.subr.mxu0 0.0
    %526 = vmatpush1.xpose.msra.mxu0 %v493
    %527 = vmatprep.subr.mxu0 0.0
    %528 = vmatpush2.xpose.msra.mxu0 0.0
    %529 = vmatprep.subr.mxu0 0.0
    %530 = vmatpush2.xpose.msra.mxu0 0.0
    %531 = vmatprep.subr.mxu0 0.0
    %532 = vmatpush2.xpose.msra.mxu0 0.0
    %533 = vmatprep.subr.mxu0 0.0
    %534 = vmatpush2.xpose.msra.mxu0 0.0
    %535 = vmatprep.subr.mxu0 0.0
    %536 = vmatpush2.xpose.msra.mxu0 0.0
    %537 = vmatprep.subr.mxu0 0.0
    %538 = vmatpush2.xpose.msra.mxu0 0.0
    %539 = vmatprep.subr.mxu0 0.0
    %540 = vmatpush2.xpose.msra.mxu0 0.0
    %541 = vmatprep.subr.mxu0 0.0
    %542 = vmatpush2.xpose.msra.mxu0 0.0
    %543 = vmatprep.subr.mxu0 0.0
    %544 = vmatpush2.xpose.msra.mxu0 0.0
    %545 = vmatprep.subr.mxu0 0.0
    %546 = vmatpush2.xpose.msra.mxu0 0.0
    %547 = vmatprep.subr.mxu0 0.0
    %548 = vmatpush2.xpose.msra.mxu0 0.0
    %549 = vmatprep.subr.mxu0 0.0
    %550 = vmatpush2.xpose.msra.mxu0 0.0
    %551 = vmatprep.subr.mxu0 0.0
    %552 = vmatpush2.xpose.msra.mxu0 0.0
    %553 = vmatprep.subr.mxu0 0.0
    %554 = vmatpush2.xpose.msra.mxu0 0.0
    %555 = vmatprep.subr.mxu0 0.0
    %556 = vmatpush2.xpose.msra.mxu0 0.0
    %557 = vmatprep.subr.mxu0 0.0
    %558 = vmatpush2.xpose.msra.mxu0 0.0
    %559 = vmatprep.mubr.f32.mxu0 0.0
    %560 = vmatmul.mubr.f32.gmra.mxu0 %v490
    %v561 = vpop.f32.mrf.mxu0
    %v562 = vadd.f32 0.0, %v561
    %v563 = vpop.f32.mrf.mxu0
    %564 = vdwg.mxu0
    %v565 = vld [vmem:[#allocation5] sm:$0xff]
    %v566 = vld [vmem:[#allocation5 + $0x8] sm:$0xff]
    %vm567 = vcmask 64512
    %v568 = vsel %vm567, %v486, -inf
    %569 = vmax.xlane.f32.xlu0 %v568
    %v570 = vpop.xlane.xlu0 %569
    %v571 = vsel %vm567, %v562, -inf
    %572 = vmax.xlane.f32.xlu0 %v571
    %v573 = vpop.xlane.xlu0 %572
    %v574 = vmax.f32 %v565, %v570
    %v575 = vmax.f32 %v566, %v573
    %v576 = vsub.f32 %v565, %v574
    %v577 = vsub.f32 %v566, %v575
    %v578 = vmul.f32 %v576, 1.442695
    %v579 = vpow.pop %v578
    %v580 = vmul.f32 %v577, 1.442695
    %v581 = vpow.pop %v580
    %583 = vset.pattern.permute.xlu0 0
    %584 = vperm.xlu0 %583, %v574
    %v585 = vpop.permute.xlu0 %584
    %588 = vset.pattern.permute.xlu0 0
    %589 = vperm.xlu0 %588, %v575
    %v590 = vpop.permute.xlu0 %589
    %v592 = vsub.f32 %v486, %v585
    %v593 = vsub.f32 %v562, %v590
    %v594 = vmul.f32 %v592, 1.442695
    %v595 = vpow.pop %v594
    %v596 = vmul.f32 %v593, 1.442695
    %v597 = vpow.pop %v596
    %v598 = vld [vmem:[#allocation6] sm:$0xff]
    %v599 = vld [vmem:[#allocation6 + $0x8] sm:$0xff]
    %v600 = vmul.f32 %v579, %v598
    %v601 = vmul.f32 %v581, %v599
    %v602 = vsel %vm567, %v595, 0.0
    %603 = vadd.xlane.f32.xlu0 %v602
    %v604 = vpop.xlane.xlu0 %603
    %v605 = vsel %vm567, %v597, 0.0
    %606 = vadd.xlane.f32.xlu0 %v605
    %v607 = vpop.xlane.xlu0 %606
    %v608 = vadd.f32 %v600, %v604
    %v609 = vadd.f32 %v601, %v607
    %vm610 = vcmask 7168
    %611 = vst.msk [vmem:[#allocation6] sm:$0xff] %vm610, %v608
    %612 = vst.msk [vmem:[#allocation6 + $0x8] sm:$0xff] %vm610, %v609
    %v613 = vld [vmem:[#allocation7] sm:$0xff]
    %v614 = vld [vmem:[#allocation7 + $0x8] sm:$0xff]
    %616 = vset.pattern.permute.xlu0 0
    %617 = vperm.xlu0 %616, %v579
    %v618 = vpop.permute.xlu0 %617
    %621 = vset.pattern.permute.xlu0 0
    %622 = vperm.xlu0 %621, %v581
    %v623 = vpop.permute.xlu0 %622
    %v625 = vmul.f32 %v618, %v613
    %v626 = vmul.f32 %v623, %v614
    %v628 = vsel %vm567, %v595, 0
    %630 = vmatprep.subr.mxu0 0.0
    %631 = vmatpush1.msra.mxu0 0.0
    %632 = vmatprep.subr.mxu0 0.0
    %633 = vmatpush1.msra.mxu0 0.0
    %634 = vmatprep.subr.mxu0 0.0
    %635 = vmatpush1.msra.mxu0 0.0
    %636 = vmatprep.subr.mxu0 0.0
    %637 = vmatpush1.msra.mxu0 0.0
    %638 = vmatprep.subr.mxu0 0.0
    %639 = vmatpush1.msra.mxu0 0.0
    %640 = vmatprep.subr.mxu0 0.0
    %641 = vmatpush1.msra.mxu0 0.0
    %642 = vmatprep.subr.mxu0 0.0
    %643 = vmatpush1.msra.mxu0 0.0
    %644 = vmatprep.subr.mxu0 0.0
    %645 = vmatpush1.msra.mxu0 0.0
    %646 = vmatprep.subr.mxu0 0.0
    %647 = vmatpush1.msra.mxu0 0.0
    %648 = vmatprep.subr.mxu0 0.0
    %649 = vmatpush1.msra.mxu0 0.0
    %650 = vmatprep.subr.mxu0 0.0
    %651 = vmatpush1.msra.mxu0 0.0
    %652 = vmatprep.subr.mxu0 0.0
    %653 = vmatpush1.msra.mxu0 0.0
    %654 = vmatprep.subr.mxu0 0.0
    %655 = vmatpush1.msra.mxu0 0.0
    %656 = vmatprep.subr.mxu0 0.0
    %657 = vmatpush1.msra.mxu0 0.0
    %658 = vmatprep.subr.mxu0 0.0
    %659 = vmatpush1.msra.mxu0 0.0
    %660 = vmatprep.subr.mxu0 0.0
    %661 = vmatpush1.msra.mxu0 %v408
    %662 = vmatprep.subr.mxu0 0.0
    %663 = vmatpush2.msra.mxu0 0.0
    %664 = vmatprep.subr.mxu0 0.0
    %665 = vmatpush2.msra.mxu0 0.0
    %666 = vmatprep.subr.mxu0 0.0
    %667 = vmatpush2.msra.mxu0 0.0
    %668 = vmatprep.subr.mxu0 0.0
    %669 = vmatpush2.msra.mxu0 0.0
    %670 = vmatprep.subr.mxu0 0.0
    %671 = vmatpush2.msra.mxu0 0.0
    %672 = vmatprep.subr.mxu0 0.0
    %673 = vmatpush2.msra.mxu0 0.0
    %674 = vmatprep.subr.mxu0 0.0
    %675 = vmatpush2.msra.mxu0 0.0
    %676 = vmatprep.subr.mxu0 0.0
    %677 = vmatpush2.msra.mxu0 0.0
    %678 = vmatprep.subr.mxu0 0.0
    %679 = vmatpush2.msra.mxu0 0.0
    %680 = vmatprep.subr.mxu0 0.0
    %681 = vmatpush2.msra.mxu0 0.0
    %682 = vmatprep.subr.mxu0 0.0
    %683 = vmatpush2.msra.mxu0 0.0
    %684 = vmatprep.subr.mxu0 0.0
    %685 = vmatpush2.msra.mxu0 0.0
    %686 = vmatprep.subr.mxu0 0.0
    %687 = vmatpush2.msra.mxu0 0.0
    %688 = vmatprep.subr.mxu0 0.0
    %689 = vmatpush2.msra.mxu0 0.0
    %690 = vmatprep.subr.mxu0 0.0
    %691 = vmatpush2.msra.mxu0 0.0
    %692 = vmatprep.subr.mxu0 0.0
    %693 = vmatpush2.msra.mxu0 0.0
    %694 = vmatprep.mubr.f32.mxu0 0.0
    %695 = vmatmul.mubr.f32.gmra.mxu0 %v628
    %v696 = vpop.f32.mrf.mxu0
    %v697 = vadd.f32 0.0, %v696
    %v698 = vpop.f32.mrf.mxu0
    %699 = vdwg.mxu0
    %v701 = vsel %vm567, %v597, 0
    %703 = vmatprep.subr.mxu0 0.0
    %704 = vmatpush1.msra.mxu0 0.0
    %705 = vmatprep.subr.mxu0 0.0
    %706 = vmatpush1.msra.mxu0 0.0
    %707 = vmatprep.subr.mxu0 0.0
    %708 = vmatpush1.msra.mxu0 0.0
    %709 = vmatprep.subr.mxu0 0.0
    %710 = vmatpush1.msra.mxu0 0.0
    %711 = vmatprep.subr.mxu0 0.0
    %712 = vmatpush1.msra.mxu0 0.0
    %713 = vmatprep.subr.mxu0 0.0
    %714 = vmatpush1.msra.mxu0 0.0
    %715 = vmatprep.subr.mxu0 0.0
    %716 = vmatpush1.msra.mxu0 0.0
    %717 = vmatprep.subr.mxu0 0.0
    %718 = vmatpush1.msra.mxu0 0.0
    %719 = vmatprep.subr.mxu0 0.0
    %720 = vmatpush1.msra.mxu0 0.0
    %721 = vmatprep.subr.mxu0 0.0
    %722 = vmatpush1.msra.mxu0 0.0
    %723 = vmatprep.subr.mxu0 0.0
    %724 = vmatpush1.msra.mxu0 0.0
    %725 = vmatprep.subr.mxu0 0.0
    %726 = vmatpush1.msra.mxu0 0.0
    %727 = vmatprep.subr.mxu0 0.0
    %728 = vmatpush1.msra.mxu0 0.0
    %729 = vmatprep.subr.mxu0 0.0
    %730 = vmatpush1.msra.mxu0 0.0
    %731 = vmatprep.subr.mxu0 0.0
    %732 = vmatpush1.msra.mxu0 0.0
    %733 = vmatprep.subr.mxu0 0.0
    %734 = vmatpush1.msra.mxu0 %v409
    %735 = vmatprep.subr.mxu0 0.0
    %736 = vmatpush2.msra.mxu0 0.0
    %737 = vmatprep.subr.mxu0 0.0
    %738 = vmatpush2.msra.mxu0 0.0
    %739 = vmatprep.subr.mxu0 0.0
    %740 = vmatpush2.msra.mxu0 0.0
    %741 = vmatprep.subr.mxu0 0.0
    %742 = vmatpush2.msra.mxu0 0.0
    %743 = vmatprep.subr.mxu0 0.0
    %744 = vmatpush2.msra.mxu0 0.0
    %745 = vmatprep.subr.mxu0 0.0
    %746 = vmatpush2.msra.mxu0 0.0
    %747 = vmatprep.subr.mxu0 0.0
    %748 = vmatpush2.msra.mxu0 0.0
    %749 = vmatprep.subr.mxu0 0.0
    %750 = vmatpush2.msra.mxu0 0.0
    %751 = vmatprep.subr.mxu0 0.0
    %752 = vmatpush2.msra.mxu0 0.0
    %753 = vmatprep.subr.mxu0 0.0
    %754 = vmatpush2.msra.mxu0 0.0
    %755 = vmatprep.subr.mxu0 0.0
    %756 = vmatpush2.msra.mxu0 0.0
    %757 = vmatprep.subr.mxu0 0.0
    %758 = vmatpush2.msra.mxu0 0.0
    %759 = vmatprep.subr.mxu0 0.0
    %760 = vmatpush2.msra.mxu0 0.0
    %761 = vmatprep.subr.mxu0 0.0
    %762 = vmatpush2.msra.mxu0 0.0
    %763 = vmatprep.subr.mxu0 0.0
    %764 = vmatpush2.msra.mxu0 0.0
    %765 = vmatprep.subr.mxu0 0.0
    %766 = vmatpush2.msra.mxu0 0.0
    %767 = vmatprep.mubr.f32.mxu0 0.0
    %768 = vmatmul.mubr.f32.gmra.mxu0 %v701
    %v769 = vpop.f32.mrf.mxu0
    %v770 = vadd.f32 0.0, %v769
    %v771 = vpop.f32.mrf.mxu0
    %772 = vdwg.mxu0
    %v773 = vadd.f32 %v625, %v697
    %v774 = vadd.f32 %v626, %v770
    %775 = vst.msk [vmem:[#allocation7] sm:$0xff] %vm412, %v773
    %776 = vst.msk [vmem:[#allocation7 + $0x8] sm:$0xff] %vm412, %v774
    %777 = vst.msk [vmem:[#allocation5] sm:$0xff] %vm610, %v574
    %778 = vst.msk [vmem:[#allocation5 + $0x8] sm:$0xff] %vm610, %v575
    // Predicated region
    $region62: #{tpu_custom_call.1} parent=1 // pred_check
      %p779 = pneg %p296
    $region63: #{tpu_custom_call.1} parent=1 // pred_check_branch
      %781 = sbr.rel (%p779) target = $region65
    $region64: #{tpu_custom_call.1} parent=1 // pred_region
      %v782 = vld [vmem:[#allocation6] sm:$0xff]
      %v783 = vld [vmem:[#allocation6 + $0x8] sm:$0xff]
      %v784 = vrcp.pop %v782
      %v785 = vrcp.pop %v783
      %v786 = vld [vmem:[#allocation7] sm:$0xff]
      %v787 = vld [vmem:[#allocation7 + $0x8] sm:$0xff]
      %789 = vset.pattern.permute.xlu0 0
      %790 = vperm.xlu0 %789, %v784
      %v791 = vpop.permute.xlu0 %790
      %794 = vset.pattern.permute.xlu0 0
      %795 = vperm.xlu0 %794, %v785
      %v796 = vpop.permute.xlu0 %795
      %v798 = vmul.f32 %v786, %v791
      %v799 = vmul.f32 %v787, %v796
      %800 = vst.msk [vmem:[#allocation17] sm:$0xff] %vm412, %v798
      %801 = vst.msk [vmem:[#allocation17 + $0x8] sm:$0xff] %vm412, %v799
    $region65: #{tpu_custom_call.1} parent=1 // pred_fallthru
      _
    // Predicated region
    $region66: #{tpu_custom_call.1} parent=1 // pred_check
      _
    $region67: #{tpu_custom_call.1} parent=1 // pred_check_branch
      %803 = sbr.rel (0) target = $region69
    $region68: #{tpu_custom_call.1} parent=1 // pred_region
      %s805 = ssub.s32 256, 256
      %806 = vsyncadd [#allocation10], %s805
      %s807 = sshll.u32 [#allocation17], 4
      %s808 = int_to_ptr.vmem [resolvable:$true] %s807
      %813 = dma.vmem_to_hbm [thread:$0]  %s808, 256, %s8, [#allocation10], 128, 128, 8
    $region69: #{tpu_custom_call.1} parent=1 // pred_fallthru
      _
    // Predicated region
    $region70: #{tpu_custom_call.1} parent=1 // pred_check
      _
    $region71: #{tpu_custom_call.1} parent=1 // pred_check_branch
      %815 = sbr.rel (0) target = $region73
    $region72: #{tpu_custom_call.1} parent=1 // pred_region
      %816 = dma.done [#allocation10], 256
    $region73: #{tpu_custom_call.1} parent=1 // pred_fallthru
      _
    %817 = vsyncpa [#allocation9], 1
    %818 = vsyncpa [#allocation12], 1
    %819 = vsyncpa [#allocation15], 1
    %820 = vsyncpa [#allocation10], 1

// kernel: tpu_custom_call.1
$region0: #{tpu_custom_call.1}
  #allocation0 [shape = 'u32[]', space=smem, size = 0x4, offset = 0x4, fixed_abs, tag = 'smem constant byte address 0x4 - core index']
  #allocation1 [shape = 'u32[144,128]{1,0:T(1,128)}', space=vmem, size = 0x12000, scoped, tag = 'internal scratch']
  #allocation2 [shape = 'f32[2,8,32]{2,1,0:T(8,128)}', space=vmem, size = 0x2000, scoped, tag = 'scratch operand']
  #allocation3 [shape = 'f32[2,8,32]{2,1,0:T(8,128)}', space=vmem, size = 0x2000, scoped, tag = 'scratch operand']
  #allocation4 [shape = 'f32[2,8,32]{2,1,0:T(8,128)}', space=vmem, size = 0x2000, scoped, tag = 'scratch operand']
  #allocation5 [shape = 'f32[2,8,1]{2,1,0:T(8,128)}', space=vmem, size = 0x2000, scoped, tag = 'scratch operand']
  #allocation6 [shape = 'f32[2,8,1]{2,1,0:T(8,128)}', space=vmem, size = 0x2000, scoped, tag = 'scratch operand']
  #allocation7 [shape = 'f32[2,8,32]{2,1,0:T(8,128)}', space=vmem, size = 0x2000, scoped, tag = 'scratch operand']
  %s0 = inlined_call_operand.hbm [shape: f32[2,8,32], index: 0, kind: input, shape index: {}]
  %s1 = inlined_call_operand.hbm [shape: f32[2,8,32], index: 1, kind: input, shape index: {}]
  %s2 = inlined_call_operand.hbm [shape: f32[32,32], index: 2, kind: input, shape index: {}]
  %s3 = inlined_call_operand.vmem [shape: f32[1,32], index: 3, kind: input, shape index: {}]
  %s4 = inlined_call_operand.hbm [shape: f32[32,32], index: 4, kind: input, shape index: {}]
  %s5 = inlined_call_operand.vmem [shape: f32[1,32], index: 5, kind: input, shape index: {}]
  %s6 = inlined_call_operand.hbm [shape: f32[32,32], index: 6, kind: input, shape index: {}]
  %s7 = inlined_call_operand.vmem [shape: f32[1,32], index: 7, kind: input, shape index: {}]
  %s8 = inlined_call_operand.hbm [shape: f32[2,8,32], index: 8, kind: output, shape index: {}]
  %s9 = sld [smem:[#allocation0]]
  $region74: #{tpu_custom_call.1} parent=0
    _
  %s11 = ssub.s32 1, %s9
  %s12 = scalar_select 0, %s11, %s9
  $region1: #{tpu_custom_call.1} parent=0
    #allocation8 [shape = 'u8[8192]{0}', space=vmem, size = 0x2000, scoped, tag = 'input window, operand 0, single buffered']
    #allocation9 [shape = 's32[1]{0}', space=sflag, size = 0x4, scoped, tag = 'scoped memory for tpu_custom_call.1']
    #allocation10 [shape = 's32[1]{0}', space=sflag, size = 0x4, scoped, tag = 'scoped memory for tpu_custom_call.1']
    #allocation11 [shape = 'u8[8192]{0}', space=vmem, size = 0x2000, scoped, tag = 'input window, operand 1, single buffered']
    #allocation12 [shape = 's32[1]{0}', space=sflag, size = 0x4, scoped, tag = 'scoped memory for tpu_custom_call.1']
    #allocation13 [shape = 'u8[16384]{0}', space=vmem, size = 0x4000, scoped, tag = 'input window, operand 2, single buffered']
    #allocation14 [shape = 'u8[16384]{0}', space=vmem, size = 0x4000, scoped, tag = 'input window, operand 4, single buffered']
    #allocation15 [shape = 's32[1]{0}', space=sflag, size = 0x4, scoped, tag = 'scoped memory for tpu_custom_call.1']
    #allocation16 [shape = 'u8[16384]{0}', space=vmem, size = 0x4000, scoped, tag = 'input window, operand 6, single buffered']
    #allocation17 [shape = 'u8[8192]{0}', space=vmem, size = 0x2000, scoped, tag = 'output window, operand 0, single buffered']
    %13 = vsyncpa [#allocation9], 0
    %14 = vsyncpa [#allocation12], 0
    %15 = vsyncpa [#allocation15], 0
    %16 = vsyncpa [#allocation10], 0
    // Predicated region
    $region2: #{tpu_custom_call.1} parent=1 // pred_check
      _
    $region3: #{tpu_custom_call.1} parent=1 // pred_check_branch
      %18 = sbr.rel (0) target = $region5
    $region4: #{tpu_custom_call.1} parent=1 // pred_region
      %s20 = ssub.s32 256, 256
      %21 = vsyncadd [#allocation9], %s20
      %s22 = sshll.u32 [#allocation8], 4
      %s23 = int_to_ptr.vmem [resolvable:$true] %s22
      %28 = dma.hbm_to_vmem [thread:$0]  %s0, 256, %s23, [#allocation9], 128, 128, 8
    $region5: #{tpu_custom_call.1} parent=1 // pred_fallthru
      _
    // Predicated region
    $region6: #{tpu_custom_call.1} parent=1 // pred_check
      _
    $region7: #{tpu_custom_call.1} parent=1 // pred_check_branch
      %30 = sbr.rel (0) target = $region9
    $region8: #{tpu_custom_call.1} parent=1 // pred_region
      %p31 = scmp.eq.s32.totalorder 0, 0
      %s32 = scalar_select %p31, 0, 0
      %s34 = ssub.s32 256, 256
      %35 = vsyncadd [#allocation12], %s34
      %s36 = smul.addr %s32, 128
      %s37 = scalar_lea.hbm %s1, %s36
      %s38 = sshll.u32 [#allocation11], 4
      %s39 = int_to_ptr.vmem [resolvable:$true] %s38
      %44 = dma.hbm_to_vmem [thread:$0]  %s37, 256, %s39, [#allocation12], 128, 128, 8
    $region9: #{tpu_custom_call.1} parent=1 // pred_fallthru
      _
    // Predicated region
    $region10: #{tpu_custom_call.1} parent=1 // pred_check
      _
    $region11: #{tpu_custom_call.1} parent=1 // pred_check_branch
      %46 = sbr.rel (0) target = $region13
    $region12: #{tpu_custom_call.1} parent=1 // pred_region
      %s48 = ssub.s32 512, 512
      %49 = vsyncadd [#allocation12], %s48
      %s50 = sshll.u32 [#allocation13], 4
      %s51 = int_to_ptr.vmem [resolvable:$true] %s50
      %56 = dma.hbm_to_vmem [thread:$0]  %s2, 512, %s51, [#allocation12], 128, 128, 8
    $region13: #{tpu_custom_call.1} parent=1 // pred_fallthru
      _
    // Predicated region
    $region14: #{tpu_custom_call.1} parent=1 // pred_check
      _
    $region15: #{tpu_custom_call.1} parent=1 // pred_check_branch
      %58 = sbr.rel (0) target = $region17
    $region16: #{tpu_custom_call.1} parent=1 // pred_region
      _
    $region17: #{tpu_custom_call.1} parent=1 // pred_fallthru
      _
    // Predicated region
    $region18: #{tpu_custom_call.1} parent=1 // pred_check
      _
    $region19: #{tpu_custom_call.1} parent=1 // pred_check_branch
      %60 = sbr.rel (0) target = $region21
    $region20: #{tpu_custom_call.1} parent=1 // pred_region
      %s62 = ssub.s32 512, 512
      %63 = vsyncadd [#allocation15], %s62
      %s64 = sshll.u32 [#allocation14], 4
      %s65 = int_to_ptr.vmem [resolvable:$true] %s64
      %70 = dma.hbm_to_vmem [thread:$0]  %s4, 512, %s65, [#allocation15], 128, 128, 8
    $region21: #{tpu_custom_call.1} parent=1 // pred_fallthru
      _
    // Predicated region
    $region22: #{tpu_custom_call.1} parent=1 // pred_check
      _
    $region23: #{tpu_custom_call.1} parent=1 // pred_check_branch
      %72 = sbr.rel (0) target = $region25
    $region24: #{tpu_custom_call.1} parent=1 // pred_region
      _
    $region25: #{tpu_custom_call.1} parent=1 // pred_fallthru
      _
    // Predicated region
    $region26: #{tpu_custom_call.1} parent=1 // pred_check
      _
    $region27: #{tpu_custom_call.1} parent=1 // pred_check_branch
      %74 = sbr.rel (0) target = $region29
    $region28: #{tpu_custom_call.1} parent=1 // pred_region
      %s76 = ssub.s32 512, 512
      %77 = vsyncadd [#allocation15], %s76
      %s78 = sshll.u32 [#allocation16], 4
      %s79 = int_to_ptr.vmem [resolvable:$true] %s78
      %84 = dma.hbm_to_vmem [thread:$0]  %s6, 512, %s79, [#allocation15], 128, 128, 8
    $region29: #{tpu_custom_call.1} parent=1 // pred_fallthru
      _
    // Predicated region
    $region30: #{tpu_custom_call.1} parent=1 // pred_check
      _
    $region31: #{tpu_custom_call.1} parent=1 // pred_check_branch
      %86 = sbr.rel (0) target = $region33
    $region32: #{tpu_custom_call.1} parent=1 // pred_region
      _
    $region33: #{tpu_custom_call.1} parent=1 // pred_fallthru
      _
    // Predicated region
    $region34: #{tpu_custom_call.1} parent=1 // pred_check
      _
    $region35: #{tpu_custom_call.1} parent=1 // pred_check_branch
      %88 = sbr.rel (0) target = $region37
    $region36: #{tpu_custom_call.1} parent=1 // pred_region
      %89 = dma.done [#allocation9], 256
    $region37: #{tpu_custom_call.1} parent=1 // pred_fallthru
      _
    // Predicated region
    $region38: #{tpu_custom_call.1} parent=1 // pred_check
      _
    $region39: #{tpu_custom_call.1} parent=1 // pred_check_branch
      %91 = sbr.rel (0) target = $region41
    $region40: #{tpu_custom_call.1} parent=1 // pred_region
      %92 = dma.done [#allocation12], 256
    $region41: #{tpu_custom_call.1} parent=1 // pred_fallthru
      _
    // Predicated region
    $region42: #{tpu_custom_call.1} parent=1 // pred_check
      _
    $region43: #{tpu_custom_call.1} parent=1 // pred_check_branch
      %94 = sbr.rel (0) target = $region45
    $region44: #{tpu_custom_call.1} parent=1 // pred_region
      %95 = dma.done [#allocation12], 512
    $region45: #{tpu_custom_call.1} parent=1 // pred_fallthru
      _
    // Predicated region
    $region46: #{tpu_custom_call.1} parent=1 // pred_check
      _
    $region47: #{tpu_custom_call.1} parent=1 // pred_check_branch
      %97 = sbr.rel (0) target = $region49
    $region48: #{tpu_custom_call.1} parent=1 // pred_region
      %98 = dma.done [#allocation15], 512
    $region49: #{tpu_custom_call.1} parent=1 // pred_fallthru
      _
    // Predicated region
    $region50: #{tpu_custom_call.1} parent=1 // pred_check
      _
    $region51: #{tpu_custom_call.1} parent=1 // pred_check_branch
      %100 = sbr.rel (0) target = $region53
    $region52: #{tpu_custom_call.1} parent=1 // pred_region
      %101 = dma.done [#allocation15], 512
    $region53: #{tpu_custom_call.1} parent=1 // pred_fallthru
      _
    %p102 = scmp.eq.s32.totalorder 0, 0
    %s103 = scalar_select %p102, 0, 0
    %s104 = smul.u32 0, 8
    %p105 = scmp.eq.s32.totalorder 0, 0
    // Predicated region
    $region54: #{tpu_custom_call.1} parent=1 // pred_check
      %p106 = pneg %p105
    $region55: #{tpu_custom_call.1} parent=1 // pred_check_branch
      %108 = sbr.rel (%p106) target = $region57
    $region56: #{tpu_custom_call.1} parent=1 // pred_region
      %v109 = vld [vmem:[#allocation11] sm:$0xff]
      %v110 = vld [vmem:[#allocation11 + $0x8] sm:$0xff]
      %v111 = vld [vmem:[#allocation14] sm:$0xff]
      %v112 = vld [vmem:[#allocation14 + $0x8] sm:$0xff]
      %v113 = vld [vmem:[#allocation14 + $0x10] sm:$0xff]
      %v114 = vld [vmem:[#allocation14 + $0x18] sm:$0xff]
      %v115 = vld [vmem:[%s5] sm:$0x1]
      %v117 = vlaneseq
      %v118 = vshrl.u32 %v117, 7
      %v119 = vsub.s32 0, %v118
      %v120 = vrot.slane %v115, %v119
      %vm122 = vcmask 261120
      %v124 = vsel %vm122, %v109, 0
      %v127 = vsel %vm122, %v110, 0
      %129 = vmatprep.subr.mxu0 0.0
      %130 = vmatpush1.msra.mxu0 0.0
      %131 = vmatprep.subr.mxu0 0.0
      %132 = vmatpush1.msra.mxu0 0.0
      %133 = vmatprep.subr.mxu0 0.0
      %134 = vmatpush1.msra.mxu0 0.0
      %135 = vmatprep.subr.mxu0 0.0
      %136 = vmatpush1.msra.mxu0 0.0
      %137 = vmatprep.subr.mxu0 0.0
      %138 = vmatpush1.msra.mxu0 0.0
      %139 = vmatprep.subr.mxu0 0.0
      %140 = vmatpush1.msra.mxu0 0.0
      %141 = vmatprep.subr.mxu0 0.0
      %142 = vmatpush1.msra.mxu0 0.0
      %143 = vmatprep.subr.mxu0 0.0
      %144 = vmatpush1.msra.mxu0 0.0
      %145 = vmatprep.subr.mxu0 0.0
      %146 = vmatpush1.msra.mxu0 0.0
      %147 = vmatprep.subr.mxu0 0.0
      %148 = vmatpush1.msra.mxu0 0.0
      %149 = vmatprep.subr.mxu0 0.0
      %150 = vmatpush1.msra.mxu0 0.0
      %151 = vmatprep.subr.mxu0 0.0
      %152 = vmatpush1.msra.mxu0 0.0
      %153 = vmatprep.subr.mxu0 0.0
      %154 = vmatpush1.msra.mxu0 %v114
      %155 = vmatprep.subr.mxu0 0.0
      %156 = vmatpush1.msra.mxu0 %v113
      %157 = vmatprep.subr.mxu0 0.0
      %158 = vmatpush1.msra.mxu0 %v112
      %159 = vmatprep.subr.mxu0 0.0
      %160 = vmatpush1.msra.mxu0 %v111
      %161 = vmatprep.subr.mxu0 0.0
      %162 = vmatpush2.msra.mxu0 0.0
      %163 = vmatprep.subr.mxu0 0.0
      %164 = vmatpush2.msra.mxu0 0.0
      %165 = vmatprep.subr.mxu0 0.0
      %166 = vmatpush2.msra.mxu0 0.0
      %167 = vmatprep.subr.mxu0 0.0
      %168 = vmatpush2.msra.mxu0 0.0
      %169 = vmatprep.subr.mxu0 0.0
      %170 = vmatpush2.msra.mxu0 0.0
      %171 = vmatprep.subr.mxu0 0.0
      %172 = vmatpush2.msra.mxu0 0.0
      %173 = vmatprep.subr.mxu0 0.0
      %174 = vmatpush2.msra.mxu0 0.0
      %175 = vmatprep.subr.mxu0 0.0
      %176 = vmatpush2.msra.mxu0 0.0
      %177 = vmatprep.subr.mxu0 0.0
      %178 = vmatpush2.msra.mxu0 0.0
      %179 = vmatprep.subr.mxu0 0.0
      %180 = vmatpush2.msra.mxu0 0.0
      %181 = vmatprep.subr.mxu0 0.0
      %182 = vmatpush2.msra.mxu0 0.0
      %183 = vmatprep.subr.mxu0 0.0
      %184 = vmatpush2.msra.mxu0 0.0
      %185 = vmatprep.subr.mxu0 0.0
      %186 = vmatpush2.msra.mxu0 0.0
      %187 = vmatprep.subr.mxu0 0.0
      %188 = vmatpush2.msra.mxu0 0.0
      %189 = vmatprep.subr.mxu0 0.0
      %190 = vmatpush2.msra.mxu0 0.0
      %191 = vmatprep.subr.mxu0 0.0
      %192 = vmatpush2.msra.mxu0 0.0
      %193 = vmatprep.mubr.f32.mxu0 0.0
      %194 = vmatmul.mubr.f32.gmra.mxu0 %v124
      %v195 = vpop.f32.mrf.mxu0
      %v196 = vadd.f32 %v120, %v195
      %v197 = vpop.f32.mrf.mxu0
      %198 = vmatprep.mubr.f32.mxu0 0.0
      %199 = vmatmul.mubr.f32.gmra.mxu0 %v127
      %v200 = vpop.f32.mrf.mxu0
      %v201 = vadd.f32 %v120, %v200
      %v202 = vpop.f32.mrf.mxu0
      %203 = vdwg.mxu0
      %v204 = vld [vmem:[#allocation16] sm:$0xff]
      %v205 = vld [vmem:[#allocation16 + $0x8] sm:$0xff]
      %v206 = vld [vmem:[#allocation16 + $0x10] sm:$0xff]
      %v207 = vld [vmem:[#allocation16 + $0x18] sm:$0xff]
      %v208 = vld [vmem:[%s7] sm:$0x1]
      %v210 = vlaneseq
      %v211 = vshrl.u32 %v210, 7
      %v212 = vsub.s32 0, %v211
      %v213 = vrot.slane %v208, %v212
      %215 = vmatprep.subr.mxu0 0.0
      %216 = vmatpush1.msra.mxu0 0.0
      %217 = vmatprep.subr.mxu0 0.0
      %218 = vmatpush1.msra.mxu0 0.0
      %219 = vmatprep.subr.mxu0 0.0
      %220 = vmatpush1.msra.mxu0 0.0
      %221 = vmatprep.subr.mxu0 0.0
      %222 = vmatpush1.msra.mxu0 0.0
      %223 = vmatprep.subr.mxu0 0.0
      %224 = vmatpush1.msra.mxu0 0.0
      %225 = vmatprep.subr.mxu0 0.0
      %226 = vmatpush1.msra.mxu0 0.0
      %227 = vmatprep.subr.mxu0 0.0
      %228 = vmatpush1.msra.mxu0 0.0
      %229 = vmatprep.subr.mxu0 0.0
      %230 = vmatpush1.msra.mxu0 0.0
      %231 = vmatprep.subr.mxu0 0.0
      %232 = vmatpush1.msra.mxu0 0.0
      %233 = vmatprep.subr.mxu0 0.0
      %234 = vmatpush1.msra.mxu0 0.0
      %235 = vmatprep.subr.mxu0 0.0
      %236 = vmatpush1.msra.mxu0 0.0
      %237 = vmatprep.subr.mxu0 0.0
      %238 = vmatpush1.msra.mxu0 0.0
      %239 = vmatprep.subr.mxu0 0.0
      %240 = vmatpush1.msra.mxu0 %v207
      %241 = vmatprep.subr.mxu0 0.0
      %242 = vmatpush1.msra.mxu0 %v206
      %243 = vmatprep.subr.mxu0 0.0
      %244 = vmatpush1.msra.mxu0 %v205
      %245 = vmatprep.subr.mxu0 0.0
      %246 = vmatpush1.msra.mxu0 %v204
      %247 = vmatprep.subr.mxu0 0.0
      %248 = vmatpush2.msra.mxu0 0.0
      %249 = vmatprep.subr.mxu0 0.0
      %250 = vmatpush2.msra.mxu0 0.0
      %251 = vmatprep.subr.mxu0 0.0
      %252 = vmatpush2.msra.mxu0 0.0
      %253 = vmatprep.subr.mxu0 0.0
      %254 = vmatpush2.msra.mxu0 0.0
      %255 = vmatprep.subr.mxu0 0.0
      %256 = vmatpush2.msra.mxu0 0.0
      %257 = vmatprep.subr.mxu0 0.0
      %258 = vmatpush2.msra.mxu0 0.0
      %259 = vmatprep.subr.mxu0 0.0
      %260 = vmatpush2.msra.mxu0 0.0
      %261 = vmatprep.subr.mxu0 0.0
      %262 = vmatpush2.msra.mxu0 0.0
      %263 = vmatprep.subr.mxu0 0.0
      %264 = vmatpush2.msra.mxu0 0.0
      %265 = vmatprep.subr.mxu0 0.0
      %266 = vmatpush2.msra.mxu0 0.0
      %267 = vmatprep.subr.mxu0 0.0
      %268 = vmatpush2.msra.mxu0 0.0
      %269 = vmatprep.subr.mxu0 0.0
      %270 = vmatpush2.msra.mxu0 0.0
      %271 = vmatprep.subr.mxu0 0.0
      %272 = vmatpush2.msra.mxu0 0.0
      %273 = vmatprep.subr.mxu0 0.0
      %274 = vmatpush2.msra.mxu0 0.0
      %275 = vmatprep.subr.mxu0 0.0
      %276 = vmatpush2.msra.mxu0 0.0
      %277 = vmatprep.subr.mxu0 0.0
      %278 = vmatpush2.msra.mxu0 0.0
      %279 = vmatprep.mubr.f32.mxu0 0.0
      %280 = vmatmul.mubr.f32.gmra.mxu0 %v124
      %v281 = vpop.f32.mrf.mxu0
      %v282 = vadd.f32 %v213, %v281
      %v283 = vpop.f32.mrf.mxu0
      %284 = vmatprep.mubr.f32.mxu0 0.0
      %285 = vmatmul.mubr.f32.gmra.mxu0 %v127
      %v286 = vpop.f32.mrf.mxu0
      %v287 = vadd.f32 %v213, %v286
      %v288 = vpop.f32.mrf.mxu0
      %289 = vdwg.mxu0
      %s290 = scalar_lea.vmem [#allocation3], %s104
      %291 = vst.msk [vmem:[%s290] sm:$0xff] %vm122, %v196
      %292 = vst.msk [vmem:[%s290 + $0x8] sm:$0xff] %vm122, %v201
      %s293 = scalar_lea.vmem [#allocation4], %s104
      %294 = vst.msk [vmem:[%s293] sm:$0xff] %vm122, %v282
      %295 = vst.msk [vmem:[%s293 + $0x8] sm:$0xff] %vm122, %v287
    $region57: #{tpu_custom_call.1} parent=1 // pred_fallthru
      _
    %p296 = scmp.eq.s32.totalorder 0, 0
    // Predicated region
    $region58: #{tpu_custom_call.1} parent=1 // pred_check
      %p297 = pneg %p296
    $region59: #{tpu_custom_call.1} parent=1 // pred_check_branch
      %299 = sbr.rel (%p297) target = $region61
    $region60: #{tpu_custom_call.1} parent=1 // pred_region
      %v300 = vld [vmem:[#allocation8] sm:$0xff]
      %v301 = vld [vmem:[#allocation8 + $0x8] sm:$0xff]
      %v302 = vld [vmem:[#allocation13] sm:$0xff]
      %v303 = vld [vmem:[#allocation13 + $0x8] sm:$0xff]
      %v304 = vld [vmem:[#allocation13 + $0x10] sm:$0xff]
      %v305 = vld [vmem:[#allocation13 + $0x18] sm:$0xff]
      %v306 = vld [vmem:[%s3] sm:$0x1]
      %v308 = vlaneseq
      %v309 = vshrl.u32 %v308, 7
      %v310 = vsub.s32 0, %v309
      %v311 = vrot.slane %v306, %v310
      %vm313 = vcmask 261120
      %v315 = vsel %vm313, %v300, 0
      %v318 = vsel %vm313, %v301, 0
      %320 = vmatprep.subr.mxu0 0.0
      %321 = vmatpush1.msra.mxu0 0.0
      %322 = vmatprep.subr.mxu0 0.0
      %323 = vmatpush1.msra.mxu0 0.0
      %324 = vmatprep.subr.mxu0 0.0
      %325 = vmatpush1.msra.mxu0 0.0
      %326 = vmatprep.subr.mxu0 0.0
      %327 = vmatpush1.msra.mxu0 0.0
      %328 = vmatprep.subr.mxu0 0.0
      %329 = vmatpush1.msra.mxu0 0.0
      %330 = vmatprep.subr.mxu0 0.0
      %331 = vmatpush1.msra.mxu0 0.0
      %332 = vmatprep.subr.mxu0 0.0
      %333 = vmatpush1.msra.mxu0 0.0
      %334 = vmatprep.subr.mxu0 0.0
      %335 = vmatpush1.msra.mxu0 0.0
      %336 = vmatprep.subr.mxu0 0.0
      %337 = vmatpush1.msra.mxu0 0.0
      %338 = vmatprep.subr.mxu0 0.0
      %339 = vmatpush1.msra.mxu0 0.0
      %340 = vmatprep.subr.mxu0 0.0
      %341 = vmatpush1.msra.mxu0 0.0
      %342 = vmatprep.subr.mxu0 0.0
      %343 = vmatpush1.msra.mxu0 0.0
      %344 = vmatprep.subr.mxu0 0.0
      %345 = vmatpush1.msra.mxu0 %v305
      %346 = vmatprep.subr.mxu0 0.0
      %347 = vmatpush1.msra.mxu0 %v304
      %348 = vmatprep.subr.mxu0 0.0
      %349 = vmatpush1.msra.mxu0 %v303
      %350 = vmatprep.subr.mxu0 0.0
      %351 = vmatpush1.msra.mxu0 %v302
      %352 = vmatprep.subr.mxu0 0.0
      %353 = vmatpush2.msra.mxu0 0.0
      %354 = vmatprep.subr.mxu0 0.0
      %355 = vmatpush2.msra.mxu0 0.0
      %356 = vmatprep.subr.mxu0 0.0
      %357 = vmatpush2.msra.mxu0 0.0
      %358 = vmatprep.subr.mxu0 0.0
      %359 = vmatpush2.msra.mxu0 0.0
      %360 = vmatprep.subr.mxu0 0.0
      %361 = vmatpush2.msra.mxu0 0.0
      %362 = vmatprep.subr.mxu0 0.0
      %363 = vmatpush2.msra.mxu0 0.0
      %364 = vmatprep.subr.mxu0 0.0
      %365 = vmatpush2.msra.mxu0 0.0
      %366 = vmatprep.subr.mxu0 0.0
      %367 = vmatpush2.msra.mxu0 0.0
      %368 = vmatprep.subr.mxu0 0.0
      %369 = vmatpush2.msra.mxu0 0.0
      %370 = vmatprep.subr.mxu0 0.0
      %371 = vmatpush2.msra.mxu0 0.0
      %372 = vmatprep.subr.mxu0 0.0
      %373 = vmatpush2.msra.mxu0 0.0
      %374 = vmatprep.subr.mxu0 0.0
      %375 = vmatpush2.msra.mxu0 0.0
      %376 = vmatprep.subr.mxu0 0.0
      %377 = vmatpush2.msra.mxu0 0.0
      %378 = vmatprep.subr.mxu0 0.0
      %379 = vmatpush2.msra.mxu0 0.0
      %380 = vmatprep.subr.mxu0 0.0
      %381 = vmatpush2.msra.mxu0 0.0
      %382 = vmatprep.subr.mxu0 0.0
      %383 = vmatpush2.msra.mxu0 0.0
      %384 = vmatprep.mubr.f32.mxu0 0.0
      %385 = vmatmul.mubr.f32.gmra.mxu0 %v315
      %v386 = vpop.f32.mrf.mxu0
      %v387 = vadd.f32 %v311, %v386
      %v388 = vpop.f32.mrf.mxu0
      %389 = vmatprep.mubr.f32.mxu0 0.0
      %390 = vmatmul.mubr.f32.gmra.mxu0 %v318
      %v391 = vpop.f32.mrf.mxu0
      %v392 = vadd.f32 %v311, %v391
      %v393 = vpop.f32.mrf.mxu0
      %394 = vdwg.mxu0
      %395 = vst.msk [vmem:[#allocation2] sm:$0xff] %vm313, %v387
      %396 = vst.msk [vmem:[#allocation2 + $0x8] sm:$0xff] %vm313, %v392
      %vm397 = vcmask 7168
      %398 = vst.msk [vmem:[#allocation5] sm:$0xff] %vm397, -inf
      %399 = vst.msk [vmem:[#allocation5 + $0x8] sm:$0xff] %vm397, -inf
      %400 = vst.msk [vmem:[#allocation6] sm:$0xff] %vm397, 0.0
      %401 = vst.msk [vmem:[#allocation6 + $0x8] sm:$0xff] %vm397, 0.0
      %402 = vst.msk [vmem:[#allocation7] sm:$0xff] %vm313, 0.0
      %403 = vst.msk [vmem:[#allocation7 + $0x8] sm:$0xff] %vm313, 0.0
    $region61: #{tpu_custom_call.1} parent=1 // pred_fallthru
      _
    %s404 = scalar_lea.vmem [#allocation3], %s104
    %v405 = vld [vmem:[%s404] sm:$0xff]
    %v406 = vld [vmem:[%s404 + $0x8] sm:$0xff]
    %s407 = scalar_lea.vmem [#allocation4], %s104
    %v408 = vld [vmem:[%s407] sm:$0xff]
    %v409 = vld [vmem:[%s407 + $0x8] sm:$0xff]
    %v410 = vld [vmem:[#allocation2] sm:$0xff]
    %v411 = vld [vmem:[#allocation2 + $0x8] sm:$0xff]
    %vm412 = vcmask 261120
    %v414 = vsel %vm412, %v410, 0
    %v417 = vsel %vm412, %v405, 0
    %419 = vmatprep.subr.mxu0 0.0
    %420 = vmatpush1.xpose.msra.mxu0 0.0
    %421 = vmatprep.subr.mxu0 0.0
    %422 = vmatpush1.xpose.msra.mxu0 0.0
    %423 = vmatprep.subr.mxu0 0.0
    %424 = vmatpush1.xpose.msra.mxu0 0.0
    %425 = vmatprep.subr.mxu0 0.0
    %426 = vmatpush1.xpose.msra.mxu0 0.0
    %427 = vmatprep.subr.mxu0 0.0
    %428 = vmatpush1.xpose.msra.mxu0 0.0
    %429 = vmatprep.subr.mxu0 0.0
    %430 = vmatpush1.xpose.msra.mxu0 0.0
    %431 = vmatprep.subr.mxu0 0.0
    %432 = vmatpush1.xpose.msra.mxu0 0.0
    %433 = vmatprep.subr.mxu0 0.0
    %434 = vmatpush1.xpose.msra.mxu0 0.0
    %435 = vmatprep.subr.mxu0 0.0
    %436 = vmatpush1.xpose.msra.mxu0 0.0
    %437 = vmatprep.subr.mxu0 0.0
    %438 = vmatpush1.xpose.msra.mxu0 0.0
    %439 = vmatprep.subr.mxu0 0.0
    %440 = vmatpush1.xpose.msra.mxu0 0.0
    %441 = vmatprep.subr.mxu0 0.0
    %442 = vmatpush1.xpose.msra.mxu0 0.0
    %443 = vmatprep.subr.mxu0 0.0
    %444 = vmatpush1.xpose.msra.mxu0 0.0
    %445 = vmatprep.subr.mxu0 0.0
    %446 = vmatpush1.xpose.msra.mxu0 0.0
    %447 = vmatprep.subr.mxu0 0.0
    %448 = vmatpush1.xpose.msra.mxu0 0.0
    %449 = vmatprep.subr.mxu0 0.0
    %450 = vmatpush1.xpose.msra.mxu0 %v417
    %451 = vmatprep.subr.mxu0 0.0
    %452 = vmatpush2.xpose.msra.mxu0 0.0
    %453 = vmatprep.subr.mxu0 0.0
    %454 = vmatpush2.xpose.msra.mxu0 0.0
    %455 = vmatprep.subr.mxu0 0.0
    %456 = vmatpush2.xpose.msra.mxu0 0.0
    %457 = vmatprep.subr.mxu0 0.0
    %458 = vmatpush2.xpose.msra.mxu0 0.0
    %459 = vmatprep.subr.mxu0 0.0
    %460 = vmatpush2.xpose.msra.mxu0 0.0
    %461 = vmatprep.subr.mxu0 0.0
    %462 = vmatpush2.xpose.msra.mxu0 0.0
    %463 = vmatprep.subr.mxu0 0.0
    %464 = vmatpush2.xpose.msra.mxu0 0.0
    %465 = vmatprep.subr.mxu0 0.0
    %466 = vmatpush2.xpose.msra.mxu0 0.0
    %467 = vmatprep.subr.mxu0 0.0
    %468 = vmatpush2.xpose.msra.mxu0 0.0
    %469 = vmatprep.subr.mxu0 0.0
    %470 = vmatpush2.xpose.msra.mxu0 0.0
    %471 = vmatprep.subr.mxu0 0.0
    %472 = vmatpush2.xpose.msra.mxu0 0.0
    %473 = vmatprep.subr.mxu0 0.0
    %474 = vmatpush2.xpose.msra.mxu0 0.0
    %475 = vmatprep.subr.mxu0 0.0
    %476 = vmatpush2.xpose.msra.mxu0 0.0
    %477 = vmatprep.subr.mxu0 0.0
    %478 = vmatpush2.xpose.msra.mxu0 0.0
    %479 = vmatprep.subr.mxu0 0.0
    %480 = vmatpush2.xpose.msra.mxu0 0.0
    %481 = vmatprep.subr.mxu0 0.0
    %482 = vmatpush2.xpose.msra.mxu0 0.0
    %483 = vmatprep.mubr.f32.mxu0 0.0
    %484 = vmatmul.mubr.f32.gmra.mxu0 %v414
    %v485 = vpop.f32.mrf.mxu0
    %v486 = vadd.f32 0.0, %v485
    %v487 = vpop.f32.mrf.mxu0
    %488 = vdwg.mxu0
    %v490 = vsel %vm412, %v411, 0
    %v493 = vsel %vm412, %v406, 0
    %495 = vmatprep.subr.mxu0 0.0
    %496 = vmatpush1.xpose.msra.mxu0 0.0
    %497 = vmatprep.subr.mxu0 0.0
    %498 = vmatpush1.xpose.msra.mxu0 0.0
    %499 = vmatprep.subr.mxu0 0.0
    %500 = vmatpush1.xpose.msra.mxu0 0.0
    %501 = vmatprep.subr.mxu0 0.0
    %502 = vmatpush1.xpose.msra.mxu0 0.0
    %503 = vmatprep.subr.mxu0 0.0
    %504 = vmatpush1.xpose.msra.mxu0 0.0
    %505 = vmatprep.subr.mxu0 0.0
    %506 = vmatpush1.xpose.msra.mxu0 0.0
    %507 = vmatprep.subr.mxu0 0.0
    %508 = vmatpush1.xpose.msra.mxu0 0.0
    %509 = vmatprep.subr.mxu0 0.0
    %510 = vmatpush1.xpose.msra.mxu0 0.0
    %511 = vmatprep.subr.mxu0 0.0
    %512 = vmatpush1.xpose.msra.mxu0 0.0
    %513 = vmatprep.subr.mxu0 0.0
    %514 = vmatpush1.xpose.msra.mxu0 0.0
    %515 = vmatprep.subr.mxu0 0.0
    %516 = vmatpush1.xpose.msra.mxu0 0.0
    %517 = vmatprep.subr.mxu0 0.0
    %518 = vmatpush1.xpose.msra.mxu0 0.0
    %519 = vmatprep.subr.mxu0 0.0
    %520 = vmatpush1.xpose.msra.mxu0 0.0
    %521 = vmatprep.subr.mxu0 0.0
    %522 = vmatpush1.xpose.msra.mxu0 0.0
    %523 = vmatprep.subr.mxu0 0.0
    %524 = vmatpush1.xpose.msra.mxu0 0.0
    %525 = vmatprep.subr.mxu0 0.0
    %526 = vmatpush1.xpose.msra.mxu0 %v493
    %527 = vmatprep.subr.mxu0 0.0
    %528 = vmatpush2.xpose.msra.mxu0 0.0
    %529 = vmatprep.subr.mxu0 0.0
    %530 = vmatpush2.xpose.msra.mxu0 0.0
    %531 = vmatprep.subr.mxu0 0.0
    %532 = vmatpush2.xpose.msra.mxu0 0.0
    %533 = vmatprep.subr.mxu0 0.0
    %534 = vmatpush2.xpose.msra.mxu0 0.0
    %535 = vmatprep.subr.mxu0 0.0
    %536 = vmatpush2.xpose.msra.mxu0 0.0
    %537 = vmatprep.subr.mxu0 0.0
    %538 = vmatpush2.xpose.msra.mxu0 0.0
    %539 = vmatprep.subr.mxu0 0.0
    %540 = vmatpush2.xpose.msra.mxu0 0.0
    %541 = vmatprep.subr.mxu0 0.0
    %542 = vmatpush2.xpose.msra.mxu0 0.0
    %543 = vmatprep.subr.mxu0 0.0
    %544 = vmatpush2.xpose.msra.mxu0 0.0
    %545 = vmatprep.subr.mxu0 0.0
    %546 = vmatpush2.xpose.msra.mxu0 0.0
    %547 = vmatprep.subr.mxu0 0.0
    %548 = vmatpush2.xpose.msra.mxu0 0.0
    %549 = vmatprep.subr.mxu0 0.0
    %550 = vmatpush2.xpose.msra.mxu0 0.0
    %551 = vmatprep.subr.mxu0 0.0
    %552 = vmatpush2.xpose.msra.mxu0 0.0
    %553 = vmatprep.subr.mxu0 0.0
    %554 = vmatpush2.xpose.msra.mxu0 0.0
    %555 = vmatprep.subr.mxu0 0.0
    %556 = vmatpush2.xpose.msra.mxu0 0.0
    %557 = vmatprep.subr.mxu0 0.0
    %558 = vmatpush2.xpose.msra.mxu0 0.0
    %559 = vmatprep.mubr.f32.mxu0 0.0
    %560 = vmatmul.mubr.f32.gmra.mxu0 %v490
    %v561 = vpop.f32.mrf.mxu0
    %v562 = vadd.f32 0.0, %v561
    %v563 = vpop.f32.mrf.mxu0
    %564 = vdwg.mxu0
    %v565 = vld [vmem:[#allocation5] sm:$0xff]
    %v566 = vld [vmem:[#allocation5 + $0x8] sm:$0xff]
    %vm567 = vcmask 64512
    %v568 = vsel %vm567, %v486, -inf
    %569 = vmax.xlane.f32.xlu0 %v568
    %v570 = vpop.xlane.xlu0 %569
    %v571 = vsel %vm567, %v562, -inf
    %572 = vmax.xlane.f32.xlu0 %v571
    %v573 = vpop.xlane.xlu0 %572
    %v574 = vmax.f32 %v565, %v570
    %v575 = vmax.f32 %v566, %v573
    %v576 = vsub.f32 %v565, %v574
    %v577 = vsub.f32 %v566, %v575
    %v578 = vmul.f32 %v576, 1.442695
    %v579 = vpow.pop %v578
    %v580 = vmul.f32 %v577, 1.442695
    %v581 = vpow.pop %v580
    %583 = vset.pattern.permute.xlu0 0
    %584 = vperm.xlu0 %583, %v574
    %v585 = vpop.permute.xlu0 %584
    %588 = vset.pattern.permute.xlu0 0
    %589 = vperm.xlu0 %588, %v575
    %v590 = vpop.permute.xlu0 %589
    %v592 = vsub.f32 %v486, %v585
    %v593 = vsub.f32 %v562, %v590
    %v594 = vmul.f32 %v592, 1.442695
    %v595 = vpow.pop %v594
    %v596 = vmul.f32 %v593, 1.442695
    %v597 = vpow.pop %v596
    %v598 = vld [vmem:[#allocation6] sm:$0xff]
    %v599 = vld [vmem:[#allocation6 + $0x8] sm:$0xff]
    %v600 = vmul.f32 %v579, %v598
    %v601 = vmul.f32 %v581, %v599
    %v602 = vsel %vm567, %v595, 0.0
    %603 = vadd.xlane.f32.xlu0 %v602
    %v604 = vpop.xlane.xlu0 %603
    %v605 = vsel %vm567, %v597, 0.0
    %606 = vadd.xlane.f32.xlu0 %v605
    %v607 = vpop.xlane.xlu0 %606
    %v608 = vadd.f32 %v600, %v604
    %v609 = vadd.f32 %v601, %v607
    %vm610 = vcmask 7168
    %611 = vst.msk [vmem:[#allocation6] sm:$0xff] %vm610, %v608
    %612 = vst.msk [vmem:[#allocation6 + $0x8] sm:$0xff] %vm610, %v609
    %v613 = vld [vmem:[#allocation7] sm:$0xff]
    %v614 = vld [vmem:[#allocation7 + $0x8] sm:$0xff]
    %616 = vset.pattern.permute.xlu0 0
    %617 = vperm.xlu0 %616, %v579
    %v618 = vpop.permute.xlu0 %617
    %621 = vset.pattern.permute.xlu0 0
    %622 = vperm.xlu0 %621, %v581
    %v623 = vpop.permute.xlu0 %622
    %v625 = vmul.f32 %v618, %v613
    %v626 = vmul.f32 %v623, %v614
    %v628 = vsel %vm567, %v595, 0
    %630 = vmatprep.subr.mxu0 0.0
    %631 = vmatpush1.msra.mxu0 0.0
    %632 = vmatprep.subr.mxu0 0.0
    %633 = vmatpush1.msra.mxu0 0.0
    %634 = vmatprep.subr.mxu0 0.0
    %635 = vmatpush1.msra.mxu0 0.0
    %636 = vmatprep.subr.mxu0 0.0
    %637 = vmatpush1.msra.mxu0 0.0
    %638 = vmatprep.subr.mxu0 0.0
    %639 = vmatpush1.msra.mxu0 0.0
    %640 = vmatprep.subr.mxu0 0.0
    %641 = vmatpush1.msra.mxu0 0.0
    %642 = vmatprep.subr.mxu0 0.0
    %643 = vmatpush1.msra.mxu0 0.0
    %644 = vmatprep.subr.mxu0 0.0
    %645 = vmatpush1.msra.mxu0 0.0
    %646 = vmatprep.subr.mxu0 0.0
    %647 = vmatpush1.msra.mxu0 0.0
    %648 = vmatprep.subr.mxu0 0.0
    %649 = vmatpush1.msra.mxu0 0.0
    %650 = vmatprep.subr.mxu0 0.0
    %651 = vmatpush1.msra.mxu0 0.0
    %652 = vmatprep.subr.mxu0 0.0
    %653 = vmatpush1.msra.mxu0 0.0
    %654 = vmatprep.subr.mxu0 0.0
    %655 = vmatpush1.msra.mxu0 0.0
    %656 = vmatprep.subr.mxu0 0.0
    %657 = vmatpush1.msra.mxu0 0.0
    %658 = vmatprep.subr.mxu0 0.0
    %659 = vmatpush1.msra.mxu0 0.0
    %660 = vmatprep.subr.mxu0 0.0
    %661 = vmatpush1.msra.mxu0 %v408
    %662 = vmatprep.subr.mxu0 0.0
    %663 = vmatpush2.msra.mxu0 0.0
    %664 = vmatprep.subr.mxu0 0.0
    %665 = vmatpush2.msra.mxu0 0.0
    %666 = vmatprep.subr.mxu0 0.0
    %667 = vmatpush2.msra.mxu0 0.0
    %668 = vmatprep.subr.mxu0 0.0
    %669 = vmatpush2.msra.mxu0 0.0
    %670 = vmatprep.subr.mxu0 0.0
    %671 = vmatpush2.msra.mxu0 0.0
    %672 = vmatprep.subr.mxu0 0.0
    %673 = vmatpush2.msra.mxu0 0.0
    %674 = vmatprep.subr.mxu0 0.0
    %675 = vmatpush2.msra.mxu0 0.0
    %676 = vmatprep.subr.mxu0 0.0
    %677 = vmatpush2.msra.mxu0 0.0
    %678 = vmatprep.subr.mxu0 0.0
    %679 = vmatpush2.msra.mxu0 0.0
    %680 = vmatprep.subr.mxu0 0.0
    %681 = vmatpush2.msra.mxu0 0.0
    %682 = vmatprep.subr.mxu0 0.0
    %683 = vmatpush2.msra.mxu0 0.0
    %684 = vmatprep.subr.mxu0 0.0
    %685 = vmatpush2.msra.mxu0 0.0
    %686 = vmatprep.subr.mxu0 0.0
    %687 = vmatpush2.msra.mxu0 0.0
    %688 = vmatprep.subr.mxu0 0.0
    %689 = vmatpush2.msra.mxu0 0.0
    %690 = vmatprep.subr.mxu0 0.0
    %691 = vmatpush2.msra.mxu0 0.0
    %692 = vmatprep.subr.mxu0 0.0
    %693 = vmatpush2.msra.mxu0 0.0
    %694 = vmatprep.mubr.f32.mxu0 0.0
    %695 = vmatmul.mubr.f32.gmra.mxu0 %v628
    %v696 = vpop.f32.mrf.mxu0
    %v697 = vadd.f32 0.0, %v696
    %v698 = vpop.f32.mrf.mxu0
    %699 = vdwg.mxu0
    %v701 = vsel %vm567, %v597, 0
    %703 = vmatprep.subr.mxu0 0.0
    %704 = vmatpush1.msra.mxu0 0.0
    %705 = vmatprep.subr.mxu0 0.0
    %706 = vmatpush1.msra.mxu0 0.0
    %707 = vmatprep.subr.mxu0 0.0
    %708 = vmatpush1.msra.mxu0 0.0
    %709 = vmatprep.subr.mxu0 0.0
    %710 = vmatpush1.msra.mxu0 0.0
    %711 = vmatprep.subr.mxu0 0.0
    %712 = vmatpush1.msra.mxu0 0.0
    %713 = vmatprep.subr.mxu0 0.0
    %714 = vmatpush1.msra.mxu0 0.0
    %715 = vmatprep.subr.mxu0 0.0
    %716 = vmatpush1.msra.mxu0 0.0
    %717 = vmatprep.subr.mxu0 0.0
    %718 = vmatpush1.msra.mxu0 0.0
    %719 = vmatprep.subr.mxu0 0.0
    %720 = vmatpush1.msra.mxu0 0.0
    %721 = vmatprep.subr.mxu0 0.0
    %722 = vmatpush1.msra.mxu0 0.0
    %723 = vmatprep.subr.mxu0 0.0
    %724 = vmatpush1.msra.mxu0 0.0
    %725 = vmatprep.subr.mxu0 0.0
    %726 = vmatpush1.msra.mxu0 0.0
    %727 = vmatprep.subr.mxu0 0.0
    %728 = vmatpush1.msra.mxu0 0.0
    %729 = vmatprep.subr.mxu0 0.0
    %730 = vmatpush1.msra.mxu0 0.0
    %731 = vmatprep.subr.mxu0 0.0
    %732 = vmatpush1.msra.mxu0 0.0
    %733 = vmatprep.subr.mxu0 0.0
    %734 = vmatpush1.msra.mxu0 %v409
    %735 = vmatprep.subr.mxu0 0.0
    %736 = vmatpush2.msra.mxu0 0.0
    %737 = vmatprep.subr.mxu0 0.0
    %738 = vmatpush2.msra.mxu0 0.0
    %739 = vmatprep.subr.mxu0 0.0
    %740 = vmatpush2.msra.mxu0 0.0
    %741 = vmatprep.subr.mxu0 0.0
    %742 = vmatpush2.msra.mxu0 0.0
    %743 = vmatprep.subr.mxu0 0.0
    %744 = vmatpush2.msra.mxu0 0.0
    %745 = vmatprep.subr.mxu0 0.0
    %746 = vmatpush2.msra.mxu0 0.0
    %747 = vmatprep.subr.mxu0 0.0
    %748 = vmatpush2.msra.mxu0 0.0
    %749 = vmatprep.subr.mxu0 0.0
    %750 = vmatpush2.msra.mxu0 0.0
    %751 = vmatprep.subr.mxu0 0.0
    %752 = vmatpush2.msra.mxu0 0.0
    %753 = vmatprep.subr.mxu0 0.0
    %754 = vmatpush2.msra.mxu0 0.0
    %755 = vmatprep.subr.mxu0 0.0
    %756 = vmatpush2.msra.mxu0 0.0
    %757 = vmatprep.subr.mxu0 0.0
    %758 = vmatpush2.msra.mxu0 0.0
    %759 = vmatprep.subr.mxu0 0.0
    %760 = vmatpush2.msra.mxu0 0.0
    %761 = vmatprep.subr.mxu0 0.0
    %762 = vmatpush2.msra.mxu0 0.0
    %763 = vmatprep.subr.mxu0 0.0
    %764 = vmatpush2.msra.mxu0 0.0
    %765 = vmatprep.subr.mxu0 0.0
    %766 = vmatpush2.msra.mxu0 0.0
    %767 = vmatprep.mubr.f32.mxu0 0.0
    %768 = vmatmul.mubr.f32.gmra.mxu0 %v701
    %v769 = vpop.f32.mrf.mxu0
    %v770 = vadd.f32 0.0, %v769
    %v771 = vpop.f32.mrf.mxu0
    %772 = vdwg.mxu0
    %v773 = vadd.f32 %v625, %v697
    %v774 = vadd.f32 %v626, %v770
    %775 = vst.msk [vmem:[#allocation7] sm:$0xff] %vm412, %v773
    %776 = vst.msk [vmem:[#allocation7 + $0x8] sm:$0xff] %vm412, %v774
    %777 = vst.msk [vmem:[#allocation5] sm:$0xff] %vm610, %v574
    %778 = vst.msk [vmem:[#allocation5 + $0x8] sm:$0xff] %vm610, %v575
    // Predicated region
    $region62: #{tpu_custom_call.1} parent=1 // pred_check
      %p779 = pneg %p296
    $region63: #{tpu_custom_call.1} parent=1 // pred_check_branch
      %781 = sbr.rel (%p779) target = $region65
    $region64: #{tpu_custom_call.1} parent=1 // pred_region
      %v782 = vld [vmem:[#allocation6] sm:$0xff]
      %v783 = vld [vmem:[#allocation6 + $0x8] sm:$0xff]
      %v784 = vrcp.pop %v782
      %v785 = vrcp.pop %v783
      %v786 = vld [vmem:[#allocation7] sm:$0xff]
      %v787 = vld [vmem:[#allocation7 + $0x8] sm:$0xff]
      %789 = vset.pattern.permute.xlu0 0
      %790 = vperm.xlu0 %789, %v784
      %v791 = vpop.permute.xlu0 %790
      %794 = vset.pattern.permute.xlu0 0
      %795 = vperm.xlu0 %794, %v785
      %v796 = vpop.permute.xlu0 %795
      %v798 = vmul.f32 %v786, %v791
      %v799 = vmul.f32 %v787, %v796
      %800 = vst.msk [vmem:[#allocation17] sm:$0xff] %vm412, %v798
      %801 = vst.msk [vmem:[#allocation17 + $0x8] sm:$0xff] %vm412, %v799
    $region65: #{tpu_custom_call.1} parent=1 // pred_fallthru
      _
    // Predicated region
    $region66: #{tpu_custom_call.1} parent=1 // pred_check
      _
    $region67: #{tpu_custom_call.1} parent=1 // pred_check_branch
      %803 = sbr.rel (0) target = $region69
    $region68: #{tpu_custom_call.1} parent=1 // pred_region
      %s805 = ssub.s32 256, 256
      %806 = vsyncadd [#allocation10], %s805
      %s807 = sshll.u32 [#allocation17], 4
      %s808 = int_to_ptr.vmem [resolvable:$true] %s807
      %813 = dma.vmem_to_hbm [thread:$0]  %s808, 256, %s8, [#allocation10], 128, 128, 8
    $region69: #{tpu_custom_call.1} parent=1 // pred_fallthru
      _
    // Predicated region
    $region70: #{tpu_custom_call.1} parent=1 // pred_check
      _
    $region71: #{tpu_custom_call.1} parent=1 // pred_check_branch
      %815 = sbr.rel (0) target = $region73
    $region72: #{tpu_custom_call.1} parent=1 // pred_region
      %816 = dma.done [#allocation10], 256
    $region73: #{tpu_custom_call.1} parent=1 // pred_fallthru
      _
    %817 = vsyncpa [#allocation9], 1
    %818 = vsyncpa [#allocation12], 1
    %819 = vsyncpa [#allocation15], 1
    %820 = vsyncpa [#allocation10], 1

</llo_original>
